<compile_context>
chip_gen: v7x
topology: tpu7x:2x2x1
jax: 0.10.0
libtpu: 0.0.40
codegen_flags: <defaults>
</compile_context>

<pallas_src>
import functools

import jax
import jax.numpy as jnp
from jax import lax
from jax.experimental import pallas as pl
from jax.experimental.pallas import tpu as pltpu

BN_EPS = 1e-5


# ---------------------------------------------------------------------------
# In-kernel helpers
# ---------------------------------------------------------------------------
def _store_taps(taps_ref, y, masks, *, W, lanes):
    """Write the 9 shifted/masked 3x3 taps of y into the bf16 rhs scratch.

    y:        (C, lanes) f32 activations, samples concatenated along lanes.
    masks:    (8, lanes) f32 {0,1} boundary masks, precomputed in glue in the same
              (ddy, ddx) order (center skipped).  They zero every lane where a roll
              crossed a row / image / sample boundary.
    taps_ref: (9*C, lanes) bf16 scratch; rows [t*C:(t+1)*C) hold tap t, matching
              the (ky*3+kx)*Cin + ci column order of the flattened weights.
    """
    C = y.shape[0]
    t = 0
    mi = 0
    for ddy in (-1, 0, 1):
        for ddx in (-1, 0, 1):
            d = ddy * W + ddx
            if d == 0:
                tap = y
            else:
                # roll brings y[m + d] to lane m; mask kills invalid positions.
                tap = pltpu.roll(y, shift=(-d) % lanes, axis=1) * masks[mi:mi + 1, :]
                mi += 1
            taps_ref[t * C:(t + 1) * C, :] = tap.astype(jnp.bfloat16)
            t += 1


def _basic_block_kernel(x_ref, bn_ref, masks_ref, w1_ref, w2_ref, o_ref, taps_ref,
                        *, W, lanes):
    bn = bn_ref[...]                       # (C, 4) f32: [s1 | b1 | b2 | 0]
    s1 = bn[:, 0:1]
    b1 = bn[:, 1:2]
    b2 = bn[:, 2:3]
    masks = masks_ref[...]                 # (8, lanes) f32 {0,1}

    x = x_ref[...]                         # (C, lanes) f32; also the residual
    y1 = jnp.maximum(x * s1 + b1, 0.0)     # bn1 + relu                  (f32 VPU)
    _store_taps(taps_ref, y1, masks, W=W, lanes=lanes)
    # conv1 (+ bn2 scale pre-folded into w1): ONE K=9*Cin bf16 MXU matmul covering
    # all samples of this grid step, f32 accumulation.
    h1 = jnp.dot(w1_ref[...], taps_ref[...], preferred_element_type=jnp.float32)
    y2 = jnp.maximum(h1 + b2, 0.0)         # bn2 bias + relu (scale already in w1)
    _store_taps(taps_ref, y2, masks, W=W, lanes=lanes)
    h2 = jnp.dot(w2_ref[...], taps_ref[...], preferred_element_type=jnp.float32)
    o_ref[...] = (h2 + x).astype(o_ref.dtype)          # + identity residual


# ---------------------------------------------------------------------------
# Glue (plain JAX): BN folding, weight flattening, masks, pallas_call plumbing
# ---------------------------------------------------------------------------
def _bn_affine(p):
    # Eval-mode BatchNorm folded to a per-channel affine.
    # TODO(synk): training-mode BN (batch statistics) needs a cross-batch reduction.
    s = p["gamma"] / jnp.sqrt(p["var"] + BN_EPS)
    b = p["beta"] - p["mean"] * s
    return s, b


def _flatten_weight(w_oihw):
    # (Cout, Cin, 3, 3) -> (Cout, 9*Cin), column order (ky*3+kx)*Cin + ci (f32).
    cout, cin = w_oihw.shape[0], w_oihw.shape[1]
    return jnp.transpose(w_oihw, (0, 2, 3, 1)).reshape(cout, 9 * cin)


def _build_tap_masks(H, W, B):
    """(8, B*H*W) {0,1} f32 validity masks, one row per non-center 3x3 tap."""
    hw = H * W
    m = jnp.arange(hw, dtype=jnp.int32)
    h = m // W
    w = m % W
    rows = []
    for ddy in (-1, 0, 1):
        for ddx in (-1, 0, 1):
            if ddy == 0 and ddx == 0:
                continue
            ok = (h + ddy >= 0) & (h + ddy < H) & (w + ddx >= 0) & (w + ddx < W)
            rows.append(ok)
    mask = jnp.stack(rows, axis=0).astype(jnp.float32)      # (8, hw)
    return jnp.tile(mask, (1, B))                           # (8, B*hw)


def _pick_samples_per_block(N):
    # v7x has 2 TensorCores/chip: keep >=2 grid steps so both get work.
    # v5e/v6e are single-TC: collapse to one grid step (saves ~0.35us/step pipeline
    # overhead and doubles the matmul lane width).
    try:
        kind = jax.devices()[0].device_kind.lower()
    except Exception:
        kind = ""
    if "v7" in kind and N % 2 == 0:
        return max(1, N // 2)
    return N


def basic_block_forward(x_nchw, params, *, samples_per_block=None):
    N, C, H, W = x_nchw.shape
    hw = H * W
    cout = params["w1"].shape[0]
    assert params["w2"].shape[0] == params["w2"].shape[1] == cout and cout == C, (
        "identity residual requires planes == inplanes (stride=1, downsample=None)")

    B = _pick_samples_per_block(N) if samples_per_block is None else samples_per_block
    assert N % B == 0
    lanes = B * hw

    s1, b1 = _bn_affine(params["bn1"])
    s2, b2 = _bn_affine(params["bn2"])
    # Merged per-channel BN operand: one (C, 4) tile instead of four (C, 1) DMAs.
    bn_packed = jnp.stack([s1, b1, b2, jnp.zeros_like(b2)], axis=1).astype(jnp.float32)

    # Flatten weights; fold bn2's scale into conv1's weights (rides free in the MXU).
    w1f = (_flatten_weight(params["w1"]) * s2[:, None]).astype(jnp.bfloat16)
    w2f = _flatten_weight(params["w2"]).astype(jnp.bfloat16)

    masks = _build_tap_masks(H, W, B)                       # (8, lanes) f32 {0,1}

    # Channel-major, all samples along the lane axis: (C, N*hw).  Cheap host-side
    # relayout; the kernel's loads, stores and matmuls are all lane-dense.
    x_cl = jnp.transpose(x_nchw, (1, 0, 2, 3)).reshape(C, N * hw)

    kernel = functools.partial(_basic_block_kernel, W=W, lanes=lanes)
    flops = 2 * 2 * N * cout * (9 * C) * hw                 # 2 convs, 2 flops/MAC
    bytes_accessed = ((x_cl.size + cout * N * hw + bn_packed.size + masks.size) * 4
                      + (w1f.size + w2f.size) * 2)

    # TODO(synk): for real ResNet sizes (C=64, hw>=1024) budget VMEM explicitly and
    # raise vmem_limit_bytes (v7x has only 64 MiB physical); unnecessary at this size.
    out_cl = pl.pallas_call(
        kernel,
        out_shape=jax.ShapeDtypeStruct((cout, N * hw), jnp.float32),
        grid_spec=pltpu.PrefetchScalarGridSpec(
            num_scalar_prefetch=0,
            grid=(N // B,),
            in_specs=[
                pl.BlockSpec((C, lanes), lambda n: (0, n)),        # x (also residual)
                pl.BlockSpec((C, 4), lambda n: (0, 0)),            # [s1|b1|b2|0]
                pl.BlockSpec((8, lanes), lambda n: (0, 0)),        # boundary masks
                pl.BlockSpec((cout, 9 * C), lambda n: (0, 0)),     # w1 (bn2-scaled)
                pl.BlockSpec((cout, 9 * cout), lambda n: (0, 0)),  # w2
            ],
            out_specs=pl.BlockSpec((cout, lanes), lambda n: (0, n)),
            scratch_shapes=[pltpu.VMEM((9 * C, lanes), jnp.bfloat16)],  # persistent taps
        ),
        compiler_params=pltpu.CompilerParams(dimension_semantics=("parallel",)),
        cost_estimate=pl.CostEstimate(flops=flops, transcendentals=0,
                                      bytes_accessed=int(bytes_accessed)),
    )(x_cl, bn_packed, masks, w1f, w2f)

    return out_cl.reshape(cout, N, H, W).transpose(1, 0, 2, 3)


# ---------------------------------------------------------------------------
# Deterministic parameter init (shapes from BasicBlock.__init__; lv_init=-5)
# ---------------------------------------------------------------------------
def init_params(key, inplanes, planes, lv_init=-5.0):
    ks = jax.random.split(key, 12)

    def bayes_conv3x3(kmu, keps, cin, cout):
        fan_in = cin * 9
        std = (2.0 / fan_in) ** 0.5
        mu = std * jax.random.normal(kmu, (cout, cin, 3, 3), jnp.float32)
        sigma = jnp.exp(0.5 * jnp.float32(lv_init))
        eps = jax.random.normal(keps, (cout, cin, 3, 3), jnp.float32)
        return mu + sigma * eps            # single reparameterized weight draw (OIHW)

    def bn(k0, k1, k2, k3, c):
        return dict(
            gamma=1.0 + 0.1 * jax.random.normal(k0, (c,), jnp.float32),
            beta=0.1 * jax.random.normal(k1, (c,), jnp.float32),
            mean=0.05 * jax.random.normal(k2, (c,), jnp.float32),
            var=0.5 + 0.5 * jnp.abs(jax.random.normal(k3, (c,), jnp.float32)),
        )

    return {
        "bn1": bn(ks[0], ks[1], ks[2], ks[3], inplanes),
        "w1": bayes_conv3x3(ks[4], ks[5], inplanes, planes),
        "bn2": bn(ks[6], ks[7], ks[8], ks[9], planes),
        "w2": bayes_conv3x3(ks[10], ks[11], planes, planes),
    }


# ---------------------------------------------------------------------------
# Pure-JAX f32 reference for correctness
# ---------------------------------------------------------------------------
def reference_forward(x_nchw, params):
    def bn_relu(t, p):
        s, b = _bn_affine(p)
        return jnp.maximum(t * s[None, :, None, None] + b[None, :, None, None], 0.0)

    def conv(t, w_oihw):
        return lax.conv_general_dilated(
            t, w_oihw, (1, 1), "SAME",
            dimension_numbers=("NCHW", "OIHW", "NCHW"))

    out = conv(bn_relu(x_nchw, params["bn1"]), params["w1"])
    out = conv(bn_relu(out, params["bn2"]), params["w2"])
    return out + x_nchw


if __name__ == "__main__":
    key = jax.random.PRNGKey(0)
    kx, kp = jax.random.split(key)

    # PreResNet first stage: planes == inplanes == 16, stride=1, downsample=None
    # (identity residual is shape-valid; C=16 also keeps bf16 tap stores tile-aligned).
    N, C, H, W = 2, 16, 16, 16
    x = jax.random.normal(kx, (N, C, H, W), jnp.float32)   # NCHW, like PyTorch
    params = init_params(kp, inplanes=C, planes=C)

    out = jax.block_until_ready(basic_block_forward(x, params))
    assert out.shape == (N, C, H, W)

    ref = reference_forward(x, params)
    # bf16 MXU operands with f32 accumulation: expect ~1e-2 abs error vs the f32
    # reference; structural bugs (wrong tap / mask / layout / BN fold) show as O(1).
    if not jnp.allclose(out, ref, atol=1e-1, rtol=1e-1):
        raise AssertionError(
            f"mismatch vs reference: max abs err = {float(jnp.max(jnp.abs(out - ref)))}")
    print("KERNEL_OK")
</pallas_src>

<mosaic_0001>
module attributes {stable_mosaic.version = 11 : i64} {
  func.func @_basic_block_kernel(%arg0: i32, %arg1: memref<16x512xf32, #tpu.memory_space<vmem>>, %arg2: memref<16x4xf32, #tpu.memory_space<vmem>>, %arg3: memref<8x512xf32, #tpu.memory_space<vmem>>, %arg4: memref<16x144xbf16, #tpu.memory_space<vmem>>, %arg5: memref<16x144xbf16, #tpu.memory_space<vmem>>, %arg6: memref<16x512xf32, #tpu.memory_space<vmem>>, %arg7: memref<144x512xbf16, #tpu.memory_space<vmem>>) attributes {dimension_semantics = [#tpu.dimension_semantics<parallel>], iteration_bounds = array<i64: 1>, scalar_prefetch = 0 : i64, scratch_operands = 1 : i64, tpu.core_type = #tpu.core_type<tc>, window_params = [{transform_indices = @transform_0, window_bounds = array<i64: 16, 512>}, {pipeline_mode = #tpu.pipeline_mode<synchronous>, transform_indices = @transform_1, window_bounds = array<i64: 16, 4>}, {pipeline_mode = #tpu.pipeline_mode<synchronous>, transform_indices = @transform_2, window_bounds = array<i64: 8, 512>}, {pipeline_mode = #tpu.pipeline_mode<synchronous>, transform_indices = @transform_3, window_bounds = array<i64: 16, 144>}, {pipeline_mode = #tpu.pipeline_mode<synchronous>, transform_indices = @transform_4, window_bounds = array<i64: 16, 144>}, {transform_indices = @transform_5, window_bounds = array<i64: 16, 512>}]} {
    %c0 = arith.constant 0 : index
    %c0_0 = arith.constant 0 : index
    %0 = vector.load %arg2[%c0, %c0_0] : memref<16x4xf32, #tpu.memory_space<vmem>>, vector<16x4xf32>
    %1 = vector.extract_strided_slice %0 {offsets = [0, 0], sizes = [16, 1], strides = [1, 1]} : vector<16x4xf32> to vector<16x1xf32>
    %2 = vector.extract_strided_slice %0 {offsets = [0, 1], sizes = [16, 1], strides = [1, 1]} : vector<16x4xf32> to vector<16x1xf32>
    %3 = vector.extract_strided_slice %0 {offsets = [0, 2], sizes = [16, 1], strides = [1, 1]} : vector<16x4xf32> to vector<16x1xf32>
    %c0_1 = arith.constant 0 : index
    %c0_2 = arith.constant 0 : index
    %4 = vector.load %arg3[%c0_1, %c0_2] : memref<8x512xf32, #tpu.memory_space<vmem>>, vector<8x512xf32>
    %c0_3 = arith.constant 0 : index
    %c0_4 = arith.constant 0 : index
    %5 = vector.load %arg1[%c0_3, %c0_4] : memref<16x512xf32, #tpu.memory_space<vmem>>, vector<16x512xf32>
    %6 = vector.broadcast %1 : vector<16x1xf32> to vector<16x512xf32>
    %7 = arith.mulf %5, %6 : vector<16x512xf32>
    %8 = vector.broadcast %2 : vector<16x1xf32> to vector<16x512xf32>
    %9 = arith.addf %7, %8 : vector<16x512xf32>
    %cst = arith.constant 0.000000e+00 : f32
    %10 = vector.broadcast %cst : f32 to vector<16x512xf32>
    %11 = arith.maximumf %9, %10 : vector<16x512xf32>
    %c17_i32 = arith.constant 17 : i32
    %12 = tpu.dynamic_rotate %11 by %c17_i32 dim 1 : vector<16x512xf32>, i32 -> vector<16x512xf32>
    %13 = vector.extract_strided_slice %4 {offsets = [0, 0], sizes = [1, 512], strides = [1, 1]} : vector<8x512xf32> to vector<1x512xf32>
    %14 = vector.broadcast %13 : vector<1x512xf32> to vector<16x512xf32>
    %15 = arith.mulf %12, %14 : vector<16x512xf32>
    %16 = arith.truncf %15 : vector<16x512xf32> to vector<16x512xbf16>
    %c0_5 = arith.constant 0 : index
    %c0_6 = arith.constant 0 : index
    %17 = vector.load %arg7[%c0_5, %c0_6] : memref<144x512xbf16, #tpu.memory_space<vmem>>, vector<16x512xbf16>
    tpu.vector_store %arg7[%c0_5, %c0_6], %16 {strides = array<i32>} : memref<144x512xbf16, #tpu.memory_space<vmem>>, vector<16x512xbf16>,
    %c16_i32 = arith.constant 16 : i32
    %18 = tpu.dynamic_rotate %11 by %c16_i32 dim 1 : vector<16x512xf32>, i32 -> vector<16x512xf32>
    %19 = vector.extract_strided_slice %4 {offsets = [1, 0], sizes = [1, 512], strides = [1, 1]} : vector<8x512xf32> to vector<1x512xf32>
    %20 = vector.broadcast %19 : vector<1x512xf32> to vector<16x512xf32>
    %21 = arith.mulf %18, %20 : vector<16x512xf32>
    %22 = arith.truncf %21 : vector<16x512xf32> to vector<16x512xbf16>
    %c16 = arith.constant 16 : index
    %c0_7 = arith.constant 0 : index
    %23 = vector.load %arg7[%c16, %c0_7] : memref<144x512xbf16, #tpu.memory_space<vmem>>, vector<16x512xbf16>
    tpu.vector_store %arg7[%c16, %c0_7], %22 {strides = array<i32>} : memref<144x512xbf16, #tpu.memory_space<vmem>>, vector<16x512xbf16>,
    %c15_i32 = arith.constant 15 : i32
    %24 = tpu.dynamic_rotate %11 by %c15_i32 dim 1 : vector<16x512xf32>, i32 -> vector<16x512xf32>
    %25 = vector.extract_strided_slice %4 {offsets = [2, 0], sizes = [1, 512], strides = [1, 1]} : vector<8x512xf32> to vector<1x512xf32>
    %26 = vector.broadcast %25 : vector<1x512xf32> to vector<16x512xf32>
    %27 = arith.mulf %24, %26 : vector<16x512xf32>
    %28 = arith.truncf %27 : vector<16x512xf32> to vector<16x512xbf16>
    %c32 = arith.constant 32 : index
    %c0_8 = arith.constant 0 : index
    %29 = vector.load %arg7[%c32, %c0_8] : memref<144x512xbf16, #tpu.memory_space<vmem>>, vector<16x512xbf16>
    tpu.vector_store %arg7[%c32, %c0_8], %28 {strides = array<i32>} : memref<144x512xbf16, #tpu.memory_space<vmem>>, vector<16x512xbf16>,
    %c1_i32 = arith.constant 1 : i32
    %30 = tpu.dynamic_rotate %11 by %c1_i32 dim 1 : vector<16x512xf32>, i32 -> vector<16x512xf32>
    %31 = vector.extract_strided_slice %4 {offsets = [3, 0], sizes = [1, 512], strides = [1, 1]} : vector<8x512xf32> to vector<1x512xf32>
    %32 = vector.broadcast %31 : vector<1x512xf32> to vector<16x512xf32>
    %33 = arith.mulf %30, %32 : vector<16x512xf32>
    %34 = arith.truncf %33 : vector<16x512xf32> to vector<16x512xbf16>
    %c48 = arith.constant 48 : index
    %c0_9 = arith.constant 0 : index
    %35 = vector.load %arg7[%c48, %c0_9] : memref<144x512xbf16, #tpu.memory_space<vmem>>, vector<16x512xbf16>
    tpu.vector_store %arg7[%c48, %c0_9], %34 {strides = array<i32>} : memref<144x512xbf16, #tpu.memory_space<vmem>>, vector<16x512xbf16>,
    %36 = arith.truncf %11 : vector<16x512xf32> to vector<16x512xbf16>
    %c64 = arith.constant 64 : index
    %c0_10 = arith.constant 0 : index
    %37 = vector.load %arg7[%c64, %c0_10] : memref<144x512xbf16, #tpu.memory_space<vmem>>, vector<16x512xbf16>
    tpu.vector_store %arg7[%c64, %c0_10], %36 {strides = array<i32>} : memref<144x512xbf16, #tpu.memory_space<vmem>>, vector<16x512xbf16>,
    %c511_i32 = arith.constant 511 : i32
    %38 = tpu.dynamic_rotate %11 by %c511_i32 dim 1 : vector<16x512xf32>, i32 -> vector<16x512xf32>
    %39 = vector.extract_strided_slice %4 {offsets = [4, 0], sizes = [1, 512], strides = [1, 1]} : vector<8x512xf32> to vector<1x512xf32>
    %40 = vector.broadcast %39 : vector<1x512xf32> to vector<16x512xf32>
    %41 = arith.mulf %38, %40 : vector<16x512xf32>
    %42 = arith.truncf %41 : vector<16x512xf32> to vector<16x512xbf16>
    %c80 = arith.constant 80 : index
    %c0_11 = arith.constant 0 : index
    %43 = vector.load %arg7[%c80, %c0_11] : memref<144x512xbf16, #tpu.memory_space<vmem>>, vector<16x512xbf16>
    tpu.vector_store %arg7[%c80, %c0_11], %42 {strides = array<i32>} : memref<144x512xbf16, #tpu.memory_space<vmem>>, vector<16x512xbf16>,
    %c497_i32 = arith.constant 497 : i32
    %44 = tpu.dynamic_rotate %11 by %c497_i32 dim 1 : vector<16x512xf32>, i32 -> vector<16x512xf32>
    %45 = vector.extract_strided_slice %4 {offsets = [5, 0], sizes = [1, 512], strides = [1, 1]} : vector<8x512xf32> to vector<1x512xf32>
    %46 = vector.broadcast %45 : vector<1x512xf32> to vector<16x512xf32>
    %47 = arith.mulf %44, %46 : vector<16x512xf32>
    %48 = arith.truncf %47 : vector<16x512xf32> to vector<16x512xbf16>
    %c96 = arith.constant 96 : index
    %c0_12 = arith.constant 0 : index
    %49 = vector.load %arg7[%c96, %c0_12] : memref<144x512xbf16, #tpu.memory_space<vmem>>, vector<16x512xbf16>
    tpu.vector_store %arg7[%c96, %c0_12], %48 {strides = array<i32>} : memref<144x512xbf16, #tpu.memory_space<vmem>>, vector<16x512xbf16>,
    %c496_i32 = arith.constant 496 : i32
    %50 = tpu.dynamic_rotate %11 by %c496_i32 dim 1 : vector<16x512xf32>, i32 -> vector<16x512xf32>
    %51 = vector.extract_strided_slice %4 {offsets = [6, 0], sizes = [1, 512], strides = [1, 1]} : vector<8x512xf32> to vector<1x512xf32>
    %52 = vector.broadcast %51 : vector<1x512xf32> to vector<16x512xf32>
    %53 = arith.mulf %50, %52 : vector<16x512xf32>
    %54 = arith.truncf %53 : vector<16x512xf32> to vector<16x512xbf16>
    %c112 = arith.constant 112 : index
    %c0_13 = arith.constant 0 : index
    %55 = vector.load %arg7[%c112, %c0_13] : memref<144x512xbf16, #tpu.memory_space<vmem>>, vector<16x512xbf16>
    tpu.vector_store %arg7[%c112, %c0_13], %54 {strides = array<i32>} : memref<144x512xbf16, #tpu.memory_space<vmem>>, vector<16x512xbf16>,
    %c495_i32 = arith.constant 495 : i32
    %56 = tpu.dynamic_rotate %11 by %c495_i32 dim 1 : vector<16x512xf32>, i32 -> vector<16x512xf32>
    %57 = vector.extract_strided_slice %4 {offsets = [7, 0], sizes = [1, 512], strides = [1, 1]} : vector<8x512xf32> to vector<1x512xf32>
    %58 = vector.broadcast %57 : vector<1x512xf32> to vector<16x512xf32>
    %59 = arith.mulf %56, %58 : vector<16x512xf32>
    %60 = arith.truncf %59 : vector<16x512xf32> to vector<16x512xbf16>
    %c128 = arith.constant 128 : index
    %c0_14 = arith.constant 0 : index
    %61 = vector.load %arg7[%c128, %c0_14] : memref<144x512xbf16, #tpu.memory_space<vmem>>, vector<16x512xbf16>
    tpu.vector_store %arg7[%c128, %c0_14], %60 {strides = array<i32>} : memref<144x512xbf16, #tpu.memory_space<vmem>>, vector<16x512xbf16>,
    %c0_15 = arith.constant 0 : index
    %c0_16 = arith.constant 0 : index
    %62 = vector.load %arg4[%c0_15, %c0_16] : memref<16x144xbf16, #tpu.memory_space<vmem>>, vector<16x144xbf16>
    %c0_17 = arith.constant 0 : index
    %c0_18 = arith.constant 0 : index
    %63 = vector.load %arg7[%c0_17, %c0_18] : memref<144x512xbf16, #tpu.memory_space<vmem>>, vector<144x512xbf16>
    %cst_19 = arith.constant dense<0.000000e+00> : vector<16x512xf32>
    %64 = tpu.matmul %62, %63, %cst_19 {dimension_numbers = #tpu.dot_dimension_numbers<[1], [0], [0], [1], [0, 0, 1, 1], [], []>} : vector<16x144xbf16>, vector<144x512xbf16>, vector<16x512xf32> -> vector<16x512xf32>
    %65 = vector.broadcast %3 : vector<16x1xf32> to vector<16x512xf32>
    %66 = arith.addf %64, %65 : vector<16x512xf32>
    %cst_20 = arith.constant 0.000000e+00 : f32
    %67 = vector.broadcast %cst_20 : f32 to vector<16x512xf32>
    %68 = arith.maximumf %66, %67 : vector<16x512xf32>
    %c17_i32_21 = arith.constant 17 : i32
    %69 = tpu.dynamic_rotate %68 by %c17_i32_21 dim 1 : vector<16x512xf32>, i32 -> vector<16x512xf32>
    %70 = vector.extract_strided_slice %4 {offsets = [0, 0], sizes = [1, 512], strides = [1, 1]} : vector<8x512xf32> to vector<1x512xf32>
    %71 = vector.broadcast %70 : vector<1x512xf32> to vector<16x512xf32>
    %72 = arith.mulf %69, %71 : vector<16x512xf32>
    %73 = arith.truncf %72 : vector<16x512xf32> to vector<16x512xbf16>
    %c0_22 = arith.constant 0 : index
    %c0_23 = arith.constant 0 : index
    %74 = vector.load %arg7[%c0_22, %c0_23] : memref<144x512xbf16, #tpu.memory_space<vmem>>, vector<16x512xbf16>
    tpu.vector_store %arg7[%c0_22, %c0_23], %73 {strides = array<i32>} : memref<144x512xbf16, #tpu.memory_space<vmem>>, vector<16x512xbf16>,
    %c16_i32_24 = arith.constant 16 : i32
    %75 = tpu.dynamic_rotate %68 by %c16_i32_24 dim 1 : vector<16x512xf32>, i32 -> vector<16x512xf32>
    %76 = vector.extract_strided_slice %4 {offsets = [1, 0], sizes = [1, 512], strides = [1, 1]} : vector<8x512xf32> to vector<1x512xf32>
    %77 = vector.broadcast %76 : vector<1x512xf32> to vector<16x512xf32>
    %78 = arith.mulf %75, %77 : vector<16x512xf32>
    %79 = arith.truncf %78 : vector<16x512xf32> to vector<16x512xbf16>
    %c16_25 = arith.constant 16 : index
    %c0_26 = arith.constant 0 : index
    %80 = vector.load %arg7[%c16_25, %c0_26] : memref<144x512xbf16, #tpu.memory_space<vmem>>, vector<16x512xbf16>
    tpu.vector_store %arg7[%c16_25, %c0_26], %79 {strides = array<i32>} : memref<144x512xbf16, #tpu.memory_space<vmem>>, vector<16x512xbf16>,
    %c15_i32_27 = arith.constant 15 : i32
    %81 = tpu.dynamic_rotate %68 by %c15_i32_27 dim 1 : vector<16x512xf32>, i32 -> vector<16x512xf32>
    %82 = vector.extract_strided_slice %4 {offsets = [2, 0], sizes = [1, 512], strides = [1, 1]} : vector<8x512xf32> to vector<1x512xf32>
    %83 = vector.broadcast %82 : vector<1x512xf32> to vector<16x512xf32>
    %84 = arith.mulf %81, %83 : vector<16x512xf32>
    %85 = arith.truncf %84 : vector<16x512xf32> to vector<16x512xbf16>
    %c32_28 = arith.constant 32 : index
    %c0_29 = arith.constant 0 : index
    %86 = vector.load %arg7[%c32_28, %c0_29] : memref<144x512xbf16, #tpu.memory_space<vmem>>, vector<16x512xbf16>
    tpu.vector_store %arg7[%c32_28, %c0_29], %85 {strides = array<i32>} : memref<144x512xbf16, #tpu.memory_space<vmem>>, vector<16x512xbf16>,
    %c1_i32_30 = arith.constant 1 : i32
    %87 = tpu.dynamic_rotate %68 by %c1_i32_30 dim 1 : vector<16x512xf32>, i32 -> vector<16x512xf32>
    %88 = vector.extract_strided_slice %4 {offsets = [3, 0], sizes = [1, 512], strides = [1, 1]} : vector<8x512xf32> to vector<1x512xf32>
    %89 = vector.broadcast %88 : vector<1x512xf32> to vector<16x512xf32>
    %90 = arith.mulf %87, %89 : vector<16x512xf32>
    %91 = arith.truncf %90 : vector<16x512xf32> to vector<16x512xbf16>
    %c48_31 = arith.constant 48 : index
    %c0_32 = arith.constant 0 : index
    %92 = vector.load %arg7[%c48_31, %c0_32] : memref<144x512xbf16, #tpu.memory_space<vmem>>, vector<16x512xbf16>
    tpu.vector_store %arg7[%c48_31, %c0_32], %91 {strides = array<i32>} : memref<144x512xbf16, #tpu.memory_space<vmem>>, vector<16x512xbf16>,
    %93 = arith.truncf %68 : vector<16x512xf32> to vector<16x512xbf16>
    %c64_33 = arith.constant 64 : index
    %c0_34 = arith.constant 0 : index
    %94 = vector.load %arg7[%c64_33, %c0_34] : memref<144x512xbf16, #tpu.memory_space<vmem>>, vector<16x512xbf16>
    tpu.vector_store %arg7[%c64_33, %c0_34], %93 {strides = array<i32>} : memref<144x512xbf16, #tpu.memory_space<vmem>>, vector<16x512xbf16>,
    %c511_i32_35 = arith.constant 511 : i32
    %95 = tpu.dynamic_rotate %68 by %c511_i32_35 dim 1 : vector<16x512xf32>, i32 -> vector<16x512xf32>
    %96 = vector.extract_strided_slice %4 {offsets = [4, 0], sizes = [1, 512], strides = [1, 1]} : vector<8x512xf32> to vector<1x512xf32>
    %97 = vector.broadcast %96 : vector<1x512xf32> to vector<16x512xf32>
    %98 = arith.mulf %95, %97 : vector<16x512xf32>
    %99 = arith.truncf %98 : vector<16x512xf32> to vector<16x512xbf16>
    %c80_36 = arith.constant 80 : index
    %c0_37 = arith.constant 0 : index
    %100 = vector.load %arg7[%c80_36, %c0_37] : memref<144x512xbf16, #tpu.memory_space<vmem>>, vector<16x512xbf16>
    tpu.vector_store %arg7[%c80_36, %c0_37], %99 {strides = array<i32>} : memref<144x512xbf16, #tpu.memory_space<vmem>>, vector<16x512xbf16>,
    %c497_i32_38 = arith.constant 497 : i32
    %101 = tpu.dynamic_rotate %68 by %c497_i32_38 dim 1 : vector<16x512xf32>, i32 -> vector<16x512xf32>
    %102 = vector.extract_strided_slice %4 {offsets = [5, 0], sizes = [1, 512], strides = [1, 1]} : vector<8x512xf32> to vector<1x512xf32>
    %103 = vector.broadcast %102 : vector<1x512xf32> to vector<16x512xf32>
    %104 = arith.mulf %101, %103 : vector<16x512xf32>
    %105 = arith.truncf %104 : vector<16x512xf32> to vector<16x512xbf16>
    %c96_39 = arith.constant 96 : index
    %c0_40 = arith.constant 0 : index
    %106 = vector.load %arg7[%c96_39, %c0_40] : memref<144x512xbf16, #tpu.memory_space<vmem>>, vector<16x512xbf16>
    tpu.vector_store %arg7[%c96_39, %c0_40], %105 {strides = array<i32>} : memref<144x512xbf16, #tpu.memory_space<vmem>>, vector<16x512xbf16>,
    %c496_i32_41 = arith.constant 496 : i32
    %107 = tpu.dynamic_rotate %68 by %c496_i32_41 dim 1 : vector<16x512xf32>, i32 -> vector<16x512xf32>
    %108 = vector.extract_strided_slice %4 {offsets = [6, 0], sizes = [1, 512], strides = [1, 1]} : vector<8x512xf32> to vector<1x512xf32>
    %109 = vector.broadcast %108 : vector<1x512xf32> to vector<16x512xf32>
    %110 = arith.mulf %107, %109 : vector<16x512xf32>
    %111 = arith.truncf %110 : vector<16x512xf32> to vector<16x512xbf16>
    %c112_42 = arith.constant 112 : index
    %c0_43 = arith.constant 0 : index
    %112 = vector.load %arg7[%c112_42, %c0_43] : memref<144x512xbf16, #tpu.memory_space<vmem>>, vector<16x512xbf16>
    tpu.vector_store %arg7[%c112_42, %c0_43], %111 {strides = array<i32>} : memref<144x512xbf16, #tpu.memory_space<vmem>>, vector<16x512xbf16>,
    %c495_i32_44 = arith.constant 495 : i32
    %113 = tpu.dynamic_rotate %68 by %c495_i32_44 dim 1 : vector<16x512xf32>, i32 -> vector<16x512xf32>
    %114 = vector.extract_strided_slice %4 {offsets = [7, 0], sizes = [1, 512], strides = [1, 1]} : vector<8x512xf32> to vector<1x512xf32>
    %115 = vector.broadcast %114 : vector<1x512xf32> to vector<16x512xf32>
    %116 = arith.mulf %113, %115 : vector<16x512xf32>
    %117 = arith.truncf %116 : vector<16x512xf32> to vector<16x512xbf16>
    %c128_45 = arith.constant 128 : index
    %c0_46 = arith.constant 0 : index
    %118 = vector.load %arg7[%c128_45, %c0_46] : memref<144x512xbf16, #tpu.memory_space<vmem>>, vector<16x512xbf16>
    tpu.vector_store %arg7[%c128_45, %c0_46], %117 {strides = array<i32>} : memref<144x512xbf16, #tpu.memory_space<vmem>>, vector<16x512xbf16>,
    %c0_47 = arith.constant 0 : index
    %c0_48 = arith.constant 0 : index
    %119 = vector.load %arg5[%c0_47, %c0_48] : memref<16x144xbf16, #tpu.memory_space<vmem>>, vector<16x144xbf16>
    %c0_49 = arith.constant 0 : index
    %c0_50 = arith.constant 0 : index
    %120 = vector.load %arg7[%c0_49, %c0_50] : memref<144x512xbf16, #tpu.memory_space<vmem>>, vector<144x512xbf16>
    %cst_51 = arith.constant dense<0.000000e+00> : vector<16x512xf32>
    %121 = tpu.matmul %119, %120, %cst_51 {dimension_numbers = #tpu.dot_dimension_numbers<[1], [0], [0], [1], [0, 0, 1, 1], [], []>} : vector<16x144xbf16>, vector<144x512xbf16>, vector<16x512xf32> -> vector<16x512xf32>
    %122 = arith.addf %121, %5 : vector<16x512xf32>
    %c0_52 = arith.constant 0 : index
    %c0_53 = arith.constant 0 : index
    %123 = vector.load %arg6[%c0_52, %c0_53] : memref<16x512xf32, #tpu.memory_space<vmem>>, vector<16x512xf32>
    tpu.vector_store %arg6[%c0_52, %c0_53], %122 {strides = array<i32>} : memref<16x512xf32, #tpu.memory_space<vmem>>, vector<16x512xf32>,
    return
  }
  func.func @transform_0(%arg0: i32) -> (i32, i32) {
    %c0_i32 = arith.constant 0 : i32
    %c0_i32_0 = arith.constant 0 : i32
    return %c0_i32, %arg0 : i32, i32
  }
  func.func @transform_1(%arg0: i32) -> (i32, i32) {
    %c0_i32 = arith.constant 0 : i32
    %c0_i32_0 = arith.constant 0 : i32
    %c0_i32_1 = arith.constant 0 : i32
    return %c0_i32, %c0_i32_0 : i32, i32
  }
  func.func @transform_2(%arg0: i32) -> (i32, i32) {
    %c0_i32 = arith.constant 0 : i32
    %c0_i32_0 = arith.constant 0 : i32
    %c0_i32_1 = arith.constant 0 : i32
    return %c0_i32, %c0_i32_0 : i32, i32
  }
  func.func @transform_3(%arg0: i32) -> (i32, i32) {
    %c0_i32 = arith.constant 0 : i32
    %c0_i32_0 = arith.constant 0 : i32
    %c0_i32_1 = arith.constant 0 : i32
    return %c0_i32, %c0_i32_0 : i32, i32
  }
  func.func @transform_4(%arg0: i32) -> (i32, i32) {
    %c0_i32 = arith.constant 0 : i32
    %c0_i32_0 = arith.constant 0 : i32
    %c0_i32_1 = arith.constant 0 : i32
    return %c0_i32, %c0_i32_0 : i32, i32
  }
  func.func @transform_5(%arg0: i32) -> (i32, i32) {
    %c0_i32 = arith.constant 0 : i32
    %c0_i32_0 = arith.constant 0 : i32
    return %c0_i32, %arg0 : i32, i32
  }
}

</mosaic_0001>

<llo_original>
// kernel: tpu_custom_call.1
$region0: #{tpu_custom_call.1}
  #allocation0 [shape = 'u32[]', space=smem, size = 0x4, offset = 0x4, fixed_abs, tag = 'smem constant byte address 0x4 - core index']
  #allocation1 [shape = 'u32[144,128]{1,0:T(1,128)}', space=vmem, size = 0x12000, scoped, tag = 'internal scratch']
  #allocation2 [shape = 'bf16[144,512]{1,0:T(16,128)(2,1)}', space=vmem, size = 0x24000, scoped, tag = 'scratch operand']
  %s0 = inlined_call_operand.hbm [shape: f32[16,512], index: 0, kind: input, shape index: {}]
  %s1 = inlined_call_operand.vmem [shape: f32[16,4], index: 1, kind: input, shape index: {}]
  %s2 = inlined_call_operand.hbm [shape: f32[8,512], index: 2, kind: input, shape index: {}]
  %s3 = inlined_call_operand.vmem [shape: bf16[16,144], index: 3, kind: input, shape index: {}]
  %s4 = inlined_call_operand.vmem [shape: bf16[16,144], index: 4, kind: input, shape index: {}]
  %s5 = inlined_call_operand.hbm [shape: f32[16,512], index: 5, kind: output, shape index: {}]
  %s6 = sld [smem:[#allocation0]]
  $region38: #{tpu_custom_call.1} parent=0
    _
  %s8 = ssub.s32 1, %s6
  %s9 = scalar_select 0, %s8, %s6
  $region1: #{tpu_custom_call.1} parent=0
    #allocation3 [shape = 'u8[32768]{0}', space=vmem, size = 0x8000, scoped, tag = 'input window, operand 0, single buffered']
    #allocation4 [shape = 's32[1]{0}', space=sflag, size = 0x4, scoped, tag = 'scoped memory for tpu_custom_call.1']
    #allocation5 [shape = 's32[1]{0}', space=sflag, size = 0x4, scoped, tag = 'scoped memory for tpu_custom_call.1']
    #allocation6 [shape = 'u8[16384]{0}', space=vmem, size = 0x4000, scoped, tag = 'input window, operand 2, single buffered']
    #allocation7 [shape = 's32[1]{0}', space=sflag, size = 0x4, scoped, tag = 'scoped memory for tpu_custom_call.1']
    #allocation8 [shape = 'u8[32768]{0}', space=vmem, size = 0x8000, scoped, tag = 'output window, operand 0, single buffered']
    %10 = vsyncpa [#allocation4], 0
    %11 = vsyncpa [#allocation7], 0
    %12 = vsyncpa [#allocation5], 0
    // Predicated region
    $region2: #{tpu_custom_call.1} parent=1 // pred_check
      _
    $region3: #{tpu_custom_call.1} parent=1 // pred_check_branch
      %14 = sbr.rel (0) target = $region5
    $region4: #{tpu_custom_call.1} parent=1 // pred_region
      %s16 = ssub.s32 1024, 1024
      %17 = vsyncadd [#allocation4], %s16
      %s18 = sshll.u32 [#allocation3], 4
      %s19 = int_to_ptr.vmem [resolvable:$true] %s18
      %24 = dma.hbm_to_vmem [thread:$0]  %s0, 1024, %s19, [#allocation4], 512, 512, 32
    $region5: #{tpu_custom_call.1} parent=1 // pred_fallthru
      _
    // Predicated region
    $region6: #{tpu_custom_call.1} parent=1 // pred_check
      _
    $region7: #{tpu_custom_call.1} parent=1 // pred_check_branch
      %26 = sbr.rel (0) target = $region9
    $region8: #{tpu_custom_call.1} parent=1 // pred_region
      _
    $region9: #{tpu_custom_call.1} parent=1 // pred_fallthru
      _
    // Predicated region
    $region10: #{tpu_custom_call.1} parent=1 // pred_check
      _
    $region11: #{tpu_custom_call.1} parent=1 // pred_check_branch
      %28 = sbr.rel (0) target = $region13
    $region12: #{tpu_custom_call.1} parent=1 // pred_region
      %s30 = ssub.s32 512, 512
      %31 = vsyncadd [#allocation7], %s30
      %s33 = sshll.u32 [#allocation6], 4
      %s34 = int_to_ptr.vmem [resolvable:$true] %s33
      %36 = dma.hbm_to_vmem [thread:$0]  %s2, 512, %s34, [#allocation7]
    $region13: #{tpu_custom_call.1} parent=1 // pred_fallthru
      _
    // Predicated region
    $region14: #{tpu_custom_call.1} parent=1 // pred_check
      _
    $region15: #{tpu_custom_call.1} parent=1 // pred_check_branch
      %38 = sbr.rel (0) target = $region17
    $region16: #{tpu_custom_call.1} parent=1 // pred_region
      _
    $region17: #{tpu_custom_call.1} parent=1 // pred_fallthru
      _
    // Predicated region
    $region18: #{tpu_custom_call.1} parent=1 // pred_check
      _
    $region19: #{tpu_custom_call.1} parent=1 // pred_check_branch
      %40 = sbr.rel (0) target = $region21
    $region20: #{tpu_custom_call.1} parent=1 // pred_region
      _
    $region21: #{tpu_custom_call.1} parent=1 // pred_fallthru
      _
    // Predicated region
    $region22: #{tpu_custom_call.1} parent=1 // pred_check
      _
    $region23: #{tpu_custom_call.1} parent=1 // pred_check_branch
      %42 = sbr.rel (0) target = $region25
    $region24: #{tpu_custom_call.1} parent=1 // pred_region
      %43 = dma.done [#allocation4], 1024
    $region25: #{tpu_custom_call.1} parent=1 // pred_fallthru
      _
    // Predicated region
    $region26: #{tpu_custom_call.1} parent=1 // pred_check
      _
    $region27: #{tpu_custom_call.1} parent=1 // pred_check_branch
      %45 = sbr.rel (0) target = $region29
    $region28: #{tpu_custom_call.1} parent=1 // pred_region
      %46 = dma.done [#allocation7], 512
    $region29: #{tpu_custom_call.1} parent=1 // pred_fallthru
      _
    %v48 = vld [vmem:[%s1] sm:$0xff]
    %v49 = vld [vmem:[%s1 + $0x8] sm:$0xff]
    %v50 = vld [vmem:[#allocation6] sm:$0xff]
    %v51 = vld [vmem:[#allocation6 + $0x8] sm:$0xff]
    %v52 = vld [vmem:[#allocation6 + $0x10] sm:$0xff]
    %v53 = vld [vmem:[#allocation6 + $0x18] sm:$0xff]
    %v54 = vld [vmem:[#allocation3] sm:$0xff]
    %v55 = vld [vmem:[#allocation3 + $0x8] sm:$0xff]
    %v56 = vld [vmem:[#allocation3 + $0x10] sm:$0xff]
    %v57 = vld [vmem:[#allocation3 + $0x18] sm:$0xff]
    %v58 = vld [vmem:[#allocation3 + $0x20] sm:$0xff]
    %v59 = vld [vmem:[#allocation3 + $0x28] sm:$0xff]
    %v60 = vld [vmem:[#allocation3 + $0x30] sm:$0xff]
    %v61 = vld [vmem:[#allocation3 + $0x38] sm:$0xff]
    %63 = vset.pattern.permute.xlu0 0
    %64 = vperm.xlu0 %63, %v48
    %v65 = vpop.permute.xlu0 %64
    %68 = vset.pattern.permute.xlu0 0
    %69 = vperm.xlu0 %68, %v49
    %v70 = vpop.permute.xlu0 %69
    %v72 = vmul.f32 %v54, %v65
    %v73 = vmul.f32 %v55, %v65
    %v74 = vmul.f32 %v56, %v65
    %v75 = vmul.f32 %v57, %v65
    %v76 = vmul.f32 %v58, %v70
    %v77 = vmul.f32 %v59, %v70
    %v78 = vmul.f32 %v60, %v70
    %v79 = vmul.f32 %v61, %v70
    %80 = vset.pattern.permute.xlu0 1
    %81 = vperm.xlu0 %80, %v48
    %v82 = vpop.permute.xlu0 %81
    %84 = vset.pattern.permute.xlu0 1
    %85 = vperm.xlu0 %84, %v49
    %v86 = vpop.permute.xlu0 %85
    %v88 = vadd.f32 %v72, %v82
    %v89 = vadd.f32 %v73, %v82
    %v90 = vadd.f32 %v74, %v82
    %v91 = vadd.f32 %v75, %v82
    %v92 = vadd.f32 %v76, %v86
    %v93 = vadd.f32 %v77, %v86
    %v94 = vadd.f32 %v78, %v86
    %v95 = vadd.f32 %v79, %v86
    %v96 = vmax.f32 %v88, 0.0
    %v97 = vmax.f32 %v89, 0.0
    %v98 = vmax.f32 %v90, 0.0
    %v99 = vmax.f32 %v91, 0.0
    %v100 = vmax.f32 %v92, 0.0
    %v101 = vmax.f32 %v93, 0.0
    %v102 = vmax.f32 %v94, 0.0
    %v103 = vmax.f32 %v95, 0.0
    %104 = vrot.lane.b32.xlu0 %v96, 17
    %v105 = vpop.permute.xlu0 %104
    %106 = vrot.lane.b32.xlu0 %v100, 17
    %v107 = vpop.permute.xlu0 %106
    %108 = vrot.lane.b32.xlu0 %v97, 17
    %v109 = vpop.permute.xlu0 %108
    %110 = vrot.lane.b32.xlu0 %v101, 17
    %v111 = vpop.permute.xlu0 %110
    %112 = vrot.lane.b32.xlu0 %v98, 17
    %v113 = vpop.permute.xlu0 %112
    %114 = vrot.lane.b32.xlu0 %v102, 17
    %v115 = vpop.permute.xlu0 %114
    %116 = vrot.lane.b32.xlu0 %v99, 17
    %v117 = vpop.permute.xlu0 %116
    %118 = vrot.lane.b32.xlu0 %v103, 17
    %v119 = vpop.permute.xlu0 %118
    %v120 = vlaneseq
    %v121 = vand.u32 %v120, 127
    %vm122 = vcmp.lt.s32.totalorder %v121, 17
    %v123 = vsel %vm122, %v113, %v117
    %v124 = vsel %vm122, %v115, %v119
    %v125 = vsel %vm122, %v109, %v113
    %v126 = vsel %vm122, %v111, %v115
    %v127 = vsel %vm122, %v105, %v109
    %v128 = vsel %vm122, %v107, %v111
    %v129 = vsel %vm122, %v117, %v105
    %v130 = vsel %vm122, %v119, %v107
    %v131 = vlaneseq
    %v132 = vshrl.u32 %v131, 7
    %v133 = vsub.s32 0, %v132
    %v134 = vrot.slane %v50, %v133
    %v135 = vlaneseq
    %v136 = vshrl.u32 %v135, 7
    %v137 = vsub.s32 0, %v136
    %v138 = vrot.slane %v51, %v137
    %v139 = vlaneseq
    %v140 = vshrl.u32 %v139, 7
    %v141 = vsub.s32 0, %v140
    %v142 = vrot.slane %v52, %v141
    %v143 = vlaneseq
    %v144 = vshrl.u32 %v143, 7
    %v145 = vsub.s32 0, %v144
    %v146 = vrot.slane %v53, %v145
    %v147 = vmul.f32 %v129, %v134
    %v148 = vmul.f32 %v127, %v138
    %v149 = vmul.f32 %v125, %v142
    %v150 = vmul.f32 %v123, %v146
    %v151 = vmul.f32 %v130, %v134
    %v152 = vmul.f32 %v128, %v138
    %v153 = vmul.f32 %v126, %v142
    %v154 = vmul.f32 %v124, %v146
    %v155 = vpack.c.bf16 %v151, %v147
    %v156 = vpack.c.bf16 %v152, %v148
    %v157 = vpack.c.bf16 %v153, %v149
    %v158 = vpack.c.bf16 %v154, %v150
    %159 = vst [vmem:[#allocation2] sm:$0xff] %v155
    %160 = vst [vmem:[#allocation2 + $0x8] sm:$0xff] %v156
    %161 = vst [vmem:[#allocation2 + $0x10] sm:$0xff] %v157
    %162 = vst [vmem:[#allocation2 + $0x18] sm:$0xff] %v158
    %163 = vrot.lane.b32.xlu0 %v96, 16
    %v164 = vpop.permute.xlu0 %163
    %165 = vrot.lane.b32.xlu0 %v100, 16
    %v166 = vpop.permute.xlu0 %165
    %167 = vrot.lane.b32.xlu0 %v97, 16
    %v168 = vpop.permute.xlu0 %167
    %169 = vrot.lane.b32.xlu0 %v101, 16
    %v170 = vpop.permute.xlu0 %169
    %171 = vrot.lane.b32.xlu0 %v98, 16
    %v172 = vpop.permute.xlu0 %171
    %173 = vrot.lane.b32.xlu0 %v102, 16
    %v174 = vpop.permute.xlu0 %173
    %175 = vrot.lane.b32.xlu0 %v99, 16
    %v176 = vpop.permute.xlu0 %175
    %177 = vrot.lane.b32.xlu0 %v103, 16
    %v178 = vpop.permute.xlu0 %177
    %vm179 = vcmp.lt.s32.totalorder %v121, 16
    %v180 = vsel %vm179, %v172, %v176
    %v181 = vsel %vm179, %v174, %v178
    %v182 = vsel %vm179, %v168, %v172
    %v183 = vsel %vm179, %v170, %v174
    %v184 = vsel %vm179, %v164, %v168
    %v185 = vsel %vm179, %v166, %v170
    %v186 = vsel %vm179, %v176, %v164
    %v187 = vsel %vm179, %v178, %v166
    %v188 = vlaneseq
    %v189 = vshrl.u32 %v188, 7
    %v190 = vsub.s32 1, %v189
    %v191 = vrot.slane %v50, %v190
    %v192 = vlaneseq
    %v193 = vshrl.u32 %v192, 7
    %v194 = vsub.s32 1, %v193
    %v195 = vrot.slane %v51, %v194
    %v196 = vlaneseq
    %v197 = vshrl.u32 %v196, 7
    %v198 = vsub.s32 1, %v197
    %v199 = vrot.slane %v52, %v198
    %v200 = vlaneseq
    %v201 = vshrl.u32 %v200, 7
    %v202 = vsub.s32 1, %v201
    %v203 = vrot.slane %v53, %v202
    %v204 = vmul.f32 %v186, %v191
    %v205 = vmul.f32 %v184, %v195
    %v206 = vmul.f32 %v182, %v199
    %v207 = vmul.f32 %v180, %v203
    %v208 = vmul.f32 %v187, %v191
    %v209 = vmul.f32 %v185, %v195
    %v210 = vmul.f32 %v183, %v199
    %v211 = vmul.f32 %v181, %v203
    %v212 = vpack.c.bf16 %v208, %v204
    %v213 = vpack.c.bf16 %v209, %v205
    %v214 = vpack.c.bf16 %v210, %v206
    %v215 = vpack.c.bf16 %v211, %v207
    %216 = vst [vmem:[#allocation2 + $0x20] sm:$0xff] %v212
    %217 = vst [vmem:[#allocation2 + $0x28] sm:$0xff] %v213
    %218 = vst [vmem:[#allocation2 + $0x30] sm:$0xff] %v214
    %219 = vst [vmem:[#allocation2 + $0x38] sm:$0xff] %v215
    %220 = vrot.lane.b32.xlu0 %v96, 15
    %v221 = vpop.permute.xlu0 %220
    %222 = vrot.lane.b32.xlu0 %v100, 15
    %v223 = vpop.permute.xlu0 %222
    %224 = vrot.lane.b32.xlu0 %v97, 15
    %v225 = vpop.permute.xlu0 %224
    %226 = vrot.lane.b32.xlu0 %v101, 15
    %v227 = vpop.permute.xlu0 %226
    %228 = vrot.lane.b32.xlu0 %v98, 15
    %v229 = vpop.permute.xlu0 %228
    %230 = vrot.lane.b32.xlu0 %v102, 15
    %v231 = vpop.permute.xlu0 %230
    %232 = vrot.lane.b32.xlu0 %v99, 15
    %v233 = vpop.permute.xlu0 %232
    %234 = vrot.lane.b32.xlu0 %v103, 15
    %v235 = vpop.permute.xlu0 %234
    %vm236 = vcmp.lt.s32.totalorder %v121, 15
    %v237 = vsel %vm236, %v229, %v233
    %v238 = vsel %vm236, %v231, %v235
    %v239 = vsel %vm236, %v225, %v229
    %v240 = vsel %vm236, %v227, %v231
    %v241 = vsel %vm236, %v221, %v225
    %v242 = vsel %vm236, %v223, %v227
    %v243 = vsel %vm236, %v233, %v221
    %v244 = vsel %vm236, %v235, %v223
    %v245 = vlaneseq
    %v246 = vshrl.u32 %v245, 7
    %v247 = vsub.s32 2, %v246
    %v248 = vrot.slane %v50, %v247
    %v249 = vlaneseq
    %v250 = vshrl.u32 %v249, 7
    %v251 = vsub.s32 2, %v250
    %v252 = vrot.slane %v51, %v251
    %v253 = vlaneseq
    %v254 = vshrl.u32 %v253, 7
    %v255 = vsub.s32 2, %v254
    %v256 = vrot.slane %v52, %v255
    %v257 = vlaneseq
    %v258 = vshrl.u32 %v257, 7
    %v259 = vsub.s32 2, %v258
    %v260 = vrot.slane %v53, %v259
    %v261 = vmul.f32 %v243, %v248
    %v262 = vmul.f32 %v241, %v252
    %v263 = vmul.f32 %v239, %v256
    %v264 = vmul.f32 %v237, %v260
    %v265 = vmul.f32 %v244, %v248
    %v266 = vmul.f32 %v242, %v252
    %v267 = vmul.f32 %v240, %v256
    %v268 = vmul.f32 %v238, %v260
    %v269 = vpack.c.bf16 %v265, %v261
    %v270 = vpack.c.bf16 %v266, %v262
    %v271 = vpack.c.bf16 %v267, %v263
    %v272 = vpack.c.bf16 %v268, %v264
    %273 = vst [vmem:[#allocation2 + $0x40] sm:$0xff] %v269
    %274 = vst [vmem:[#allocation2 + $0x48] sm:$0xff] %v270
    %275 = vst [vmem:[#allocation2 + $0x50] sm:$0xff] %v271
    %276 = vst [vmem:[#allocation2 + $0x58] sm:$0xff] %v272
    %277 = vrot.lane.b32.xlu0 %v96, 1
    %v278 = vpop.permute.xlu0 %277
    %279 = vrot.lane.b32.xlu0 %v100, 1
    %v280 = vpop.permute.xlu0 %279
    %281 = vrot.lane.b32.xlu0 %v97, 1
    %v282 = vpop.permute.xlu0 %281
    %283 = vrot.lane.b32.xlu0 %v101, 1
    %v284 = vpop.permute.xlu0 %283
    %285 = vrot.lane.b32.xlu0 %v98, 1
    %v286 = vpop.permute.xlu0 %285
    %287 = vrot.lane.b32.xlu0 %v102, 1
    %v288 = vpop.permute.xlu0 %287
    %289 = vrot.lane.b32.xlu0 %v99, 1
    %v290 = vpop.permute.xlu0 %289
    %291 = vrot.lane.b32.xlu0 %v103, 1
    %v292 = vpop.permute.xlu0 %291
    %vm293 = vcmp.lt.s32.totalorder %v121, 1
    %v294 = vsel %vm293, %v286, %v290
    %v295 = vsel %vm293, %v288, %v292
    %v296 = vsel %vm293, %v282, %v286
    %v297 = vsel %vm293, %v284, %v288
    %v298 = vsel %vm293, %v278, %v282
    %v299 = vsel %vm293, %v280, %v284
    %v300 = vsel %vm293, %v290, %v278
    %v301 = vsel %vm293, %v292, %v280
    %v302 = vlaneseq
    %v303 = vshrl.u32 %v302, 7
    %v304 = vsub.s32 3, %v303
    %v305 = vrot.slane %v50, %v304
    %v306 = vlaneseq
    %v307 = vshrl.u32 %v306, 7
    %v308 = vsub.s32 3, %v307
    %v309 = vrot.slane %v51, %v308
    %v310 = vlaneseq
    %v311 = vshrl.u32 %v310, 7
    %v312 = vsub.s32 3, %v311
    %v313 = vrot.slane %v52, %v312
    %v314 = vlaneseq
    %v315 = vshrl.u32 %v314, 7
    %v316 = vsub.s32 3, %v315
    %v317 = vrot.slane %v53, %v316
    %v318 = vmul.f32 %v300, %v305
    %v319 = vmul.f32 %v298, %v309
    %v320 = vmul.f32 %v296, %v313
    %v321 = vmul.f32 %v294, %v317
    %v322 = vmul.f32 %v301, %v305
    %v323 = vmul.f32 %v299, %v309
    %v324 = vmul.f32 %v297, %v313
    %v325 = vmul.f32 %v295, %v317
    %v326 = vpack.c.bf16 %v322, %v318
    %v327 = vpack.c.bf16 %v323, %v319
    %v328 = vpack.c.bf16 %v324, %v320
    %v329 = vpack.c.bf16 %v325, %v321
    %330 = vst [vmem:[#allocation2 + $0x60] sm:$0xff] %v326
    %331 = vst [vmem:[#allocation2 + $0x68] sm:$0xff] %v327
    %332 = vst [vmem:[#allocation2 + $0x70] sm:$0xff] %v328
    %333 = vst [vmem:[#allocation2 + $0x78] sm:$0xff] %v329
    %v334 = vpack.c.bf16 %v100, %v96
    %v335 = vpack.c.bf16 %v101, %v97
    %v336 = vpack.c.bf16 %v102, %v98
    %v337 = vpack.c.bf16 %v103, %v99
    %338 = vst [vmem:[#allocation2 + $0x80] sm:$0xff] %v334
    %339 = vst [vmem:[#allocation2 + $0x88] sm:$0xff] %v335
    %340 = vst [vmem:[#allocation2 + $0x90] sm:$0xff] %v336
    %341 = vst [vmem:[#allocation2 + $0x98] sm:$0xff] %v337
    %342 = vrot.lane.b32.xlu0 %v96, 127
    %v343 = vpop.permute.xlu0 %342
    %344 = vrot.lane.b32.xlu0 %v100, 127
    %v345 = vpop.permute.xlu0 %344
    %346 = vrot.lane.b32.xlu0 %v97, 127
    %v347 = vpop.permute.xlu0 %346
    %348 = vrot.lane.b32.xlu0 %v101, 127
    %v349 = vpop.permute.xlu0 %348
    %350 = vrot.lane.b32.xlu0 %v98, 127
    %v351 = vpop.permute.xlu0 %350
    %352 = vrot.lane.b32.xlu0 %v102, 127
    %v353 = vpop.permute.xlu0 %352
    %354 = vrot.lane.b32.xlu0 %v99, 127
    %v355 = vpop.permute.xlu0 %354
    %356 = vrot.lane.b32.xlu0 %v103, 127
    %v357 = vpop.permute.xlu0 %356
    %vm358 = vcmp.lt.s32.totalorder %v121, 127
    %v359 = vsel %vm358, %v351, %v355
    %v360 = vsel %vm358, %v353, %v357
    %v361 = vsel %vm358, %v347, %v351
    %v362 = vsel %vm358, %v349, %v353
    %v363 = vsel %vm358, %v343, %v347
    %v364 = vsel %vm358, %v345, %v349
    %v365 = vsel %vm358, %v355, %v343
    %v366 = vsel %vm358, %v357, %v345
    %v367 = vlaneseq
    %v368 = vshrl.u32 %v367, 7
    %v369 = vsub.s32 4, %v368
    %v370 = vrot.slane %v50, %v369
    %v371 = vlaneseq
    %v372 = vshrl.u32 %v371, 7
    %v373 = vsub.s32 4, %v372
    %v374 = vrot.slane %v51, %v373
    %v375 = vlaneseq
    %v376 = vshrl.u32 %v375, 7
    %v377 = vsub.s32 4, %v376
    %v378 = vrot.slane %v52, %v377
    %v379 = vlaneseq
    %v380 = vshrl.u32 %v379, 7
    %v381 = vsub.s32 4, %v380
    %v382 = vrot.slane %v53, %v381
    %v383 = vmul.f32 %v363, %v370
    %v384 = vmul.f32 %v361, %v374
    %v385 = vmul.f32 %v359, %v378
    %v386 = vmul.f32 %v365, %v382
    %v387 = vmul.f32 %v364, %v370
    %v388 = vmul.f32 %v362, %v374
    %v389 = vmul.f32 %v360, %v378
    %v390 = vmul.f32 %v366, %v382
    %v391 = vpack.c.bf16 %v387, %v383
    %v392 = vpack.c.bf16 %v388, %v384
    %v393 = vpack.c.bf16 %v389, %v385
    %v394 = vpack.c.bf16 %v390, %v386
    %395 = vst [vmem:[#allocation2 + $0xa0] sm:$0xff] %v391
    %396 = vst [vmem:[#allocation2 + $0xa8] sm:$0xff] %v392
    %397 = vst [vmem:[#allocation2 + $0xb0] sm:$0xff] %v393
    %398 = vst [vmem:[#allocation2 + $0xb8] sm:$0xff] %v394
    %399 = vrot.lane.b32.xlu0 %v96, 113
    %v400 = vpop.permute.xlu0 %399
    %401 = vrot.lane.b32.xlu0 %v100, 113
    %v402 = vpop.permute.xlu0 %401
    %403 = vrot.lane.b32.xlu0 %v97, 113
    %v404 = vpop.permute.xlu0 %403
    %405 = vrot.lane.b32.xlu0 %v101, 113
    %v406 = vpop.permute.xlu0 %405
    %407 = vrot.lane.b32.xlu0 %v98, 113
    %v408 = vpop.permute.xlu0 %407
    %409 = vrot.lane.b32.xlu0 %v102, 113
    %v410 = vpop.permute.xlu0 %409
    %411 = vrot.lane.b32.xlu0 %v99, 113
    %v412 = vpop.permute.xlu0 %411
    %413 = vrot.lane.b32.xlu0 %v103, 113
    %v414 = vpop.permute.xlu0 %413
    %vm415 = vcmp.lt.s32.totalorder %v121, 113
    %v416 = vsel %vm415, %v408, %v412
    %v417 = vsel %vm415, %v410, %v414
    %v418 = vsel %vm415, %v404, %v408
    %v419 = vsel %vm415, %v406, %v410
    %v420 = vsel %vm415, %v400, %v404
    %v421 = vsel %vm415, %v402, %v406
    %v422 = vsel %vm415, %v412, %v400
    %v423 = vsel %vm415, %v414, %v402
    %v424 = vlaneseq
    %v425 = vshrl.u32 %v424, 7
    %v426 = vsub.s32 5, %v425
    %v427 = vrot.slane %v50, %v426
    %v428 = vlaneseq
    %v429 = vshrl.u32 %v428, 7
    %v430 = vsub.s32 5, %v429
    %v431 = vrot.slane %v51, %v430
    %v432 = vlaneseq
    %v433 = vshrl.u32 %v432, 7
    %v434 = vsub.s32 5, %v433
    %v435 = vrot.slane %v52, %v434
    %v436 = vlaneseq
    %v437 = vshrl.u32 %v436, 7
    %v438 = vsub.s32 5, %v437
    %v439 = vrot.slane %v53, %v438
    %v440 = vmul.f32 %v420, %v427
    %v441 = vmul.f32 %v418, %v431
    %v442 = vmul.f32 %v416, %v435
    %v443 = vmul.f32 %v422, %v439
    %v444 = vmul.f32 %v421, %v427
    %v445 = vmul.f32 %v419, %v431
    %v446 = vmul.f32 %v417, %v435
    %v447 = vmul.f32 %v423, %v439
    %v448 = vpack.c.bf16 %v444, %v440
    %v449 = vpack.c.bf16 %v445, %v441
    %v450 = vpack.c.bf16 %v446, %v442
    %v451 = vpack.c.bf16 %v447, %v443
    %452 = vst [vmem:[#allocation2 + $0xc0] sm:$0xff] %v448
    %453 = vst [vmem:[#allocation2 + $0xc8] sm:$0xff] %v449
    %454 = vst [vmem:[#allocation2 + $0xd0] sm:$0xff] %v450
    %455 = vst [vmem:[#allocation2 + $0xd8] sm:$0xff] %v451
    %456 = vrot.lane.b32.xlu0 %v96, 112
    %v457 = vpop.permute.xlu0 %456
    %458 = vrot.lane.b32.xlu0 %v100, 112
    %v459 = vpop.permute.xlu0 %458
    %460 = vrot.lane.b32.xlu0 %v97, 112
    %v461 = vpop.permute.xlu0 %460
    %462 = vrot.lane.b32.xlu0 %v101, 112
    %v463 = vpop.permute.xlu0 %462
    %464 = vrot.lane.b32.xlu0 %v98, 112
    %v465 = vpop.permute.xlu0 %464
    %466 = vrot.lane.b32.xlu0 %v102, 112
    %v467 = vpop.permute.xlu0 %466
    %468 = vrot.lane.b32.xlu0 %v99, 112
    %v469 = vpop.permute.xlu0 %468
    %470 = vrot.lane.b32.xlu0 %v103, 112
    %v471 = vpop.permute.xlu0 %470
    %vm472 = vcmp.lt.s32.totalorder %v121, 112
    %v473 = vsel %vm472, %v465, %v469
    %v474 = vsel %vm472, %v467, %v471
    %v475 = vsel %vm472, %v461, %v465
    %v476 = vsel %vm472, %v463, %v467
    %v477 = vsel %vm472, %v457, %v461
    %v478 = vsel %vm472, %v459, %v463
    %v479 = vsel %vm472, %v469, %v457
    %v480 = vsel %vm472, %v471, %v459
    %v481 = vlaneseq
    %v482 = vshrl.u32 %v481, 7
    %v483 = vsub.s32 6, %v482
    %v484 = vrot.slane %v50, %v483
    %v485 = vlaneseq
    %v486 = vshrl.u32 %v485, 7
    %v487 = vsub.s32 6, %v486
    %v488 = vrot.slane %v51, %v487
    %v489 = vlaneseq
    %v490 = vshrl.u32 %v489, 7
    %v491 = vsub.s32 6, %v490
    %v492 = vrot.slane %v52, %v491
    %v493 = vlaneseq
    %v494 = vshrl.u32 %v493, 7
    %v495 = vsub.s32 6, %v494
    %v496 = vrot.slane %v53, %v495
    %v497 = vmul.f32 %v477, %v484
    %v498 = vmul.f32 %v475, %v488
    %v499 = vmul.f32 %v473, %v492
    %v500 = vmul.f32 %v479, %v496
    %v501 = vmul.f32 %v478, %v484
    %v502 = vmul.f32 %v476, %v488
    %v503 = vmul.f32 %v474, %v492
    %v504 = vmul.f32 %v480, %v496
    %v505 = vpack.c.bf16 %v501, %v497
    %v506 = vpack.c.bf16 %v502, %v498
    %v507 = vpack.c.bf16 %v503, %v499
    %v508 = vpack.c.bf16 %v504, %v500
    %509 = vst [vmem:[#allocation2 + $0xe0] sm:$0xff] %v505
    %510 = vst [vmem:[#allocation2 + $0xe8] sm:$0xff] %v506
    %511 = vst [vmem:[#allocation2 + $0xf0] sm:$0xff] %v507
    %512 = vst [vmem:[#allocation2 + $0xf8] sm:$0xff] %v508
    %513 = vrot.lane.b32.xlu0 %v96, 111
    %v514 = vpop.permute.xlu0 %513
    %515 = vrot.lane.b32.xlu0 %v100, 111
    %v516 = vpop.permute.xlu0 %515
    %517 = vrot.lane.b32.xlu0 %v97, 111
    %v518 = vpop.permute.xlu0 %517
    %519 = vrot.lane.b32.xlu0 %v101, 111
    %v520 = vpop.permute.xlu0 %519
    %521 = vrot.lane.b32.xlu0 %v98, 111
    %v522 = vpop.permute.xlu0 %521
    %523 = vrot.lane.b32.xlu0 %v102, 111
    %v524 = vpop.permute.xlu0 %523
    %525 = vrot.lane.b32.xlu0 %v99, 111
    %v526 = vpop.permute.xlu0 %525
    %527 = vrot.lane.b32.xlu0 %v103, 111
    %v528 = vpop.permute.xlu0 %527
    %vm529 = vcmp.lt.s32.totalorder %v121, 111
    %v530 = vsel %vm529, %v522, %v526
    %v531 = vsel %vm529, %v524, %v528
    %v532 = vsel %vm529, %v518, %v522
    %v533 = vsel %vm529, %v520, %v524
    %v534 = vsel %vm529, %v514, %v518
    %v535 = vsel %vm529, %v516, %v520
    %v536 = vsel %vm529, %v526, %v514
    %v537 = vsel %vm529, %v528, %v516
    %v538 = vlaneseq
    %v539 = vshrl.u32 %v538, 7
    %v540 = vsub.s32 7, %v539
    %v541 = vrot.slane %v50, %v540
    %v542 = vlaneseq
    %v543 = vshrl.u32 %v542, 7
    %v544 = vsub.s32 7, %v543
    %v545 = vrot.slane %v51, %v544
    %v546 = vlaneseq
    %v547 = vshrl.u32 %v546, 7
    %v548 = vsub.s32 7, %v547
    %v549 = vrot.slane %v52, %v548
    %v550 = vlaneseq
    %v551 = vshrl.u32 %v550, 7
    %v552 = vsub.s32 7, %v551
    %v553 = vrot.slane %v53, %v552
    %v554 = vmul.f32 %v534, %v541
    %v555 = vmul.f32 %v532, %v545
    %v556 = vmul.f32 %v530, %v549
    %v557 = vmul.f32 %v536, %v553
    %v558 = vmul.f32 %v535, %v541
    %v559 = vmul.f32 %v533, %v545
    %v560 = vmul.f32 %v531, %v549
    %v561 = vmul.f32 %v537, %v553
    %v562 = vpack.c.bf16 %v558, %v554
    %v563 = vpack.c.bf16 %v559, %v555
    %v564 = vpack.c.bf16 %v560, %v556
    %v565 = vpack.c.bf16 %v561, %v557
    %566 = vst [vmem:[#allocation2 + $0x100] sm:$0xff] %v562
    %567 = vst [vmem:[#allocation2 + $0x108] sm:$0xff] %v563
    %568 = vst [vmem:[#allocation2 + $0x110] sm:$0xff] %v564
    %569 = vst [vmem:[#allocation2 + $0x118] sm:$0xff] %v565
    %v570 = vld [vmem:[%s3] sm:$0xff]
    %v571 = vld [vmem:[%s3 + $0x8] sm:$0xff]
    %v572 = vld [vmem:[#allocation2] sm:$0xff]
    %v573 = vld [vmem:[#allocation2 + $0x8] sm:$0xff]
    %v574 = vld [vmem:[#allocation2 + $0x10] sm:$0xff]
    %v575 = vld [vmem:[#allocation2 + $0x18] sm:$0xff]
    %v576 = vld [vmem:[#allocation2 + $0x20] sm:$0xff]
    %v577 = vld [vmem:[#allocation2 + $0x28] sm:$0xff]
    %v578 = vld [vmem:[#allocation2 + $0x30] sm:$0xff]
    %v579 = vld [vmem:[#allocation2 + $0x38] sm:$0xff]
    %v580 = vld [vmem:[#allocation2 + $0x40] sm:$0xff]
    %v581 = vld [vmem:[#allocation2 + $0x48] sm:$0xff]
    %v582 = vld [vmem:[#allocation2 + $0x50] sm:$0xff]
    %v583 = vld [vmem:[#allocation2 + $0x58] sm:$0xff]
    %v584 = vld [vmem:[#allocation2 + $0x60] sm:$0xff]
    %v585 = vld [vmem:[#allocation2 + $0x68] sm:$0xff]
    %v586 = vld [vmem:[#allocation2 + $0x70] sm:$0xff]
    %v587 = vld [vmem:[#allocation2 + $0x78] sm:$0xff]
    %v588 = vld [vmem:[#allocation2 + $0x80] sm:$0xff]
    %v589 = vld [vmem:[#allocation2 + $0x88] sm:$0xff]
    %v590 = vld [vmem:[#allocation2 + $0x90] sm:$0xff]
    %v591 = vld [vmem:[#allocation2 + $0x98] sm:$0xff]
    %v592 = vld [vmem:[#allocation2 + $0xa0] sm:$0xff]
    %v593 = vld [vmem:[#allocation2 + $0xa8] sm:$0xff]
    %v594 = vld [vmem:[#allocation2 + $0xb0] sm:$0xff]
    %v595 = vld [vmem:[#allocation2 + $0xb8] sm:$0xff]
    %v596 = vld [vmem:[#allocation2 + $0xc0] sm:$0xff]
    %v597 = vld [vmem:[#allocation2 + $0xc8] sm:$0xff]
    %v598 = vld [vmem:[#allocation2 + $0xd0] sm:$0xff]
    %v599 = vld [vmem:[#allocation2 + $0xd8] sm:$0xff]
    %v600 = vld [vmem:[#allocation2 + $0xe0] sm:$0xff]
    %v601 = vld [vmem:[#allocation2 + $0xe8] sm:$0xff]
    %v602 = vld [vmem:[#allocation2 + $0xf0] sm:$0xff]
    %v603 = vld [vmem:[#allocation2 + $0xf8] sm:$0xff]
    %v604 = vld [vmem:[#allocation2 + $0x100] sm:$0xff]
    %v605 = vld [vmem:[#allocation2 + $0x108] sm:$0xff]
    %v606 = vld [vmem:[#allocation2 + $0x110] sm:$0xff]
    %v607 = vld [vmem:[#allocation2 + $0x118] sm:$0xff]
    %608 = vset.pattern.permute.xlu0 2
    %609 = vperm.xlu0 %608, %v48
    %v610 = vpop.permute.xlu0 %609
    %612 = vset.pattern.permute.xlu0 2
    %613 = vperm.xlu0 %612, %v49
    %v614 = vpop.permute.xlu0 %613
    %v618 = vunpack.c.l.b16 %v570
    %v619 = vunpack.c.h.b16 %v570
    %v620 = vunpack.c.l.b16 %v571
    %v621 = vunpack.c.h.b16 %v571
    %v622 = vpack.c.b16 %v620, %v618
    %v623 = vpack.c.b16 %v621, %v619
    %vm625 = vcmask 130048
    %v627 = vsel %vm625, %v623, 0
    %629 = vmatprep.subr.bf16.mxu0 %v573
    %630 = vmatpush1.bf16.msra.mxu0 %v572
    %631 = vmatprep.subr.bf16.mxu0 %v577
    %632 = vmatpush1.bf16.msra.mxu0 %v576
    %633 = vmatprep.subr.bf16.mxu0 %v581
    %634 = vmatpush1.bf16.msra.mxu0 %v580
    %635 = vmatprep.subr.bf16.mxu0 %v585
    %636 = vmatpush1.bf16.msra.mxu0 %v584
    %637 = vmatprep.subr.bf16.mxu0 %v589
    %638 = vmatpush1.bf16.msra.mxu0 %v588
    %639 = vmatprep.subr.bf16.mxu0 %v593
    %640 = vmatpush1.bf16.msra.mxu0 %v592
    %641 = vmatprep.subr.bf16.mxu0 %v597
    %642 = vmatpush1.bf16.msra.mxu0 %v596
    %643 = vmatprep.subr.bf16.mxu0 %v601
    %644 = vmatpush1.bf16.msra.mxu0 %v600
    %645 = vmatprep.subr.bf16.mxu0 %v605
    %646 = vmatpush1.bf16.msra.mxu0 %v604
    %647 = vmatprep.subr.bf16.mxu0 0
    %648 = vmatpush1.bf16.msra.mxu0 0
    %649 = vmatprep.subr.bf16.mxu0 0
    %650 = vmatpush1.bf16.msra.mxu0 0
    %651 = vmatprep.subr.bf16.mxu0 0
    %652 = vmatpush1.bf16.msra.mxu0 0
    %653 = vmatprep.subr.bf16.mxu0 0
    %654 = vmatpush1.bf16.msra.mxu0 0
    %655 = vmatprep.subr.bf16.mxu0 0
    %656 = vmatpush1.bf16.msra.mxu0 0
    %657 = vmatprep.subr.bf16.mxu0 0
    %658 = vmatpush1.bf16.msra.mxu0 0
    %659 = vmatprep.subr.bf16.mxu0 0
    %660 = vmatpush1.bf16.msra.mxu0 0
    %661 = vmatprep.mubr.bf16.mxu0 %v627
    %662 = vmatmul.mubr.bf16.gmra.mrb[0].mxu0 %v622
    %v663 = vpop.f32.mrb[0].mxu0
    %v664 = vadd.f32 %v610, %v663
    %v665 = vpop.f32.mrb[0].mxu0
    %v666 = vadd.f32 %v610, %v665
    %v667 = vpop.f32.mrb[0].mxu0
    %v668 = vadd.f32 %v614, %v667
    %v669 = vpop.f32.mrb[0].mxu0
    %v670 = vadd.f32 %v614, %v669
    %671 = vdwg.mxu0
    %672 = vmatprep.subr.bf16.mxu0 %v575
    %673 = vmatpush1.bf16.msra.mxu0 %v574
    %674 = vmatprep.subr.bf16.mxu0 %v579
    %675 = vmatpush1.bf16.msra.mxu0 %v578
    %676 = vmatprep.subr.bf16.mxu0 %v583
    %677 = vmatpush1.bf16.msra.mxu0 %v582
    %678 = vmatprep.subr.bf16.mxu0 %v587
    %679 = vmatpush1.bf16.msra.mxu0 %v586
    %680 = vmatprep.subr.bf16.mxu0 %v591
    %681 = vmatpush1.bf16.msra.mxu0 %v590
    %682 = vmatprep.subr.bf16.mxu0 %v595
    %683 = vmatpush1.bf16.msra.mxu0 %v594
    %684 = vmatprep.subr.bf16.mxu0 %v599
    %685 = vmatpush1.bf16.msra.mxu0 %v598
    %686 = vmatprep.subr.bf16.mxu0 %v603
    %687 = vmatpush1.bf16.msra.mxu0 %v602
    %688 = vmatprep.subr.bf16.mxu0 %v607
    %689 = vmatpush1.bf16.msra.mxu0 %v606
    %690 = vmatprep.subr.bf16.mxu0 0
    %691 = vmatpush1.bf16.msra.mxu0 0
    %692 = vmatprep.subr.bf16.mxu0 0
    %693 = vmatpush1.bf16.msra.mxu0 0
    %694 = vmatprep.subr.bf16.mxu0 0
    %695 = vmatpush1.bf16.msra.mxu0 0
    %696 = vmatprep.subr.bf16.mxu0 0
    %697 = vmatpush1.bf16.msra.mxu0 0
    %698 = vmatprep.subr.bf16.mxu0 0
    %699 = vmatpush1.bf16.msra.mxu0 0
    %700 = vmatprep.subr.bf16.mxu0 0
    %701 = vmatpush1.bf16.msra.mxu0 0
    %702 = vmatprep.subr.bf16.mxu0 0
    %703 = vmatpush1.bf16.msra.mxu0 0
    %704 = vmatprep.mubr.bf16.mxu0 %v627
    %705 = vmatmul.mubr.bf16.gmra.mrb[0].mxu0 %v622
    %v706 = vpop.f32.mrb[0].mxu0
    %v707 = vadd.f32 %v610, %v706
    %v708 = vpop.f32.mrb[0].mxu0
    %v709 = vadd.f32 %v610, %v708
    %v710 = vpop.f32.mrb[0].mxu0
    %v711 = vadd.f32 %v614, %v710
    %v712 = vpop.f32.mrb[0].mxu0
    %v713 = vadd.f32 %v614, %v712
    %714 = vdwg.mxu0
    %v715 = vmax.f32 %v664, 0.0
    %v716 = vmax.f32 %v666, 0.0
    %v717 = vmax.f32 %v707, 0.0
    %v718 = vmax.f32 %v709, 0.0
    %v719 = vmax.f32 %v668, 0.0
    %v720 = vmax.f32 %v670, 0.0
    %v721 = vmax.f32 %v711, 0.0
    %v722 = vmax.f32 %v713, 0.0
    %723 = vrot.lane.b32.xlu0 %v715, 17
    %v724 = vpop.permute.xlu0 %723
    %725 = vrot.lane.b32.xlu0 %v719, 17
    %v726 = vpop.permute.xlu0 %725
    %727 = vrot.lane.b32.xlu0 %v716, 17
    %v728 = vpop.permute.xlu0 %727
    %729 = vrot.lane.b32.xlu0 %v720, 17
    %v730 = vpop.permute.xlu0 %729
    %731 = vrot.lane.b32.xlu0 %v717, 17
    %v732 = vpop.permute.xlu0 %731
    %733 = vrot.lane.b32.xlu0 %v721, 17
    %v734 = vpop.permute.xlu0 %733
    %735 = vrot.lane.b32.xlu0 %v718, 17
    %v736 = vpop.permute.xlu0 %735
    %737 = vrot.lane.b32.xlu0 %v722, 17
    %v738 = vpop.permute.xlu0 %737
    %v739 = vsel %vm122, %v732, %v736
    %v740 = vsel %vm122, %v734, %v738
    %v741 = vsel %vm122, %v728, %v732
    %v742 = vsel %vm122, %v730, %v734
    %v743 = vsel %vm122, %v724, %v728
    %v744 = vsel %vm122, %v726, %v730
    %v745 = vsel %vm122, %v736, %v724
    %v746 = vsel %vm122, %v738, %v726
    %v747 = vmul.f32 %v745, %v134
    %v748 = vmul.f32 %v743, %v138
    %v749 = vmul.f32 %v741, %v142
    %v750 = vmul.f32 %v739, %v146
    %v751 = vmul.f32 %v746, %v134
    %v752 = vmul.f32 %v744, %v138
    %v753 = vmul.f32 %v742, %v142
    %v754 = vmul.f32 %v740, %v146
    %v755 = vpack.c.bf16 %v751, %v747
    %v756 = vpack.c.bf16 %v752, %v748
    %v757 = vpack.c.bf16 %v753, %v749
    %v758 = vpack.c.bf16 %v754, %v750
    %759 = vst [vmem:[#allocation2] sm:$0xff] %v755
    %760 = vst [vmem:[#allocation2 + $0x8] sm:$0xff] %v756
    %761 = vst [vmem:[#allocation2 + $0x10] sm:$0xff] %v757
    %762 = vst [vmem:[#allocation2 + $0x18] sm:$0xff] %v758
    %763 = vrot.lane.b32.xlu0 %v715, 16
    %v764 = vpop.permute.xlu0 %763
    %765 = vrot.lane.b32.xlu0 %v719, 16
    %v766 = vpop.permute.xlu0 %765
    %767 = vrot.lane.b32.xlu0 %v716, 16
    %v768 = vpop.permute.xlu0 %767
    %769 = vrot.lane.b32.xlu0 %v720, 16
    %v770 = vpop.permute.xlu0 %769
    %771 = vrot.lane.b32.xlu0 %v717, 16
    %v772 = vpop.permute.xlu0 %771
    %773 = vrot.lane.b32.xlu0 %v721, 16
    %v774 = vpop.permute.xlu0 %773
    %775 = vrot.lane.b32.xlu0 %v718, 16
    %v776 = vpop.permute.xlu0 %775
    %777 = vrot.lane.b32.xlu0 %v722, 16
    %v778 = vpop.permute.xlu0 %777
    %v779 = vsel %vm179, %v772, %v776
    %v780 = vsel %vm179, %v774, %v778
    %v781 = vsel %vm179, %v768, %v772
    %v782 = vsel %vm179, %v770, %v774
    %v783 = vsel %vm179, %v764, %v768
    %v784 = vsel %vm179, %v766, %v770
    %v785 = vsel %vm179, %v776, %v764
    %v786 = vsel %vm179, %v778, %v766
    %v787 = vmul.f32 %v785, %v191
    %v788 = vmul.f32 %v783, %v195
    %v789 = vmul.f32 %v781, %v199
    %v790 = vmul.f32 %v779, %v203
    %v791 = vmul.f32 %v786, %v191
    %v792 = vmul.f32 %v784, %v195
    %v793 = vmul.f32 %v782, %v199
    %v794 = vmul.f32 %v780, %v203
    %v795 = vpack.c.bf16 %v791, %v787
    %v796 = vpack.c.bf16 %v792, %v788
    %v797 = vpack.c.bf16 %v793, %v789
    %v798 = vpack.c.bf16 %v794, %v790
    %799 = vst [vmem:[#allocation2 + $0x20] sm:$0xff] %v795
    %800 = vst [vmem:[#allocation2 + $0x28] sm:$0xff] %v796
    %801 = vst [vmem:[#allocation2 + $0x30] sm:$0xff] %v797
    %802 = vst [vmem:[#allocation2 + $0x38] sm:$0xff] %v798
    %803 = vrot.lane.b32.xlu0 %v715, 15
    %v804 = vpop.permute.xlu0 %803
    %805 = vrot.lane.b32.xlu0 %v719, 15
    %v806 = vpop.permute.xlu0 %805
    %807 = vrot.lane.b32.xlu0 %v716, 15
    %v808 = vpop.permute.xlu0 %807
    %809 = vrot.lane.b32.xlu0 %v720, 15
    %v810 = vpop.permute.xlu0 %809
    %811 = vrot.lane.b32.xlu0 %v717, 15
    %v812 = vpop.permute.xlu0 %811
    %813 = vrot.lane.b32.xlu0 %v721, 15
    %v814 = vpop.permute.xlu0 %813
    %815 = vrot.lane.b32.xlu0 %v718, 15
    %v816 = vpop.permute.xlu0 %815
    %817 = vrot.lane.b32.xlu0 %v722, 15
    %v818 = vpop.permute.xlu0 %817
    %v819 = vsel %vm236, %v812, %v816
    %v820 = vsel %vm236, %v814, %v818
    %v821 = vsel %vm236, %v808, %v812
    %v822 = vsel %vm236, %v810, %v814
    %v823 = vsel %vm236, %v804, %v808
    %v824 = vsel %vm236, %v806, %v810
    %v825 = vsel %vm236, %v816, %v804
    %v826 = vsel %vm236, %v818, %v806
    %v827 = vmul.f32 %v825, %v248
    %v828 = vmul.f32 %v823, %v252
    %v829 = vmul.f32 %v821, %v256
    %v830 = vmul.f32 %v819, %v260
    %v831 = vmul.f32 %v826, %v248
    %v832 = vmul.f32 %v824, %v252
    %v833 = vmul.f32 %v822, %v256
    %v834 = vmul.f32 %v820, %v260
    %v835 = vpack.c.bf16 %v831, %v827
    %v836 = vpack.c.bf16 %v832, %v828
    %v837 = vpack.c.bf16 %v833, %v829
    %v838 = vpack.c.bf16 %v834, %v830
    %839 = vst [vmem:[#allocation2 + $0x40] sm:$0xff] %v835
    %840 = vst [vmem:[#allocation2 + $0x48] sm:$0xff] %v836
    %841 = vst [vmem:[#allocation2 + $0x50] sm:$0xff] %v837
    %842 = vst [vmem:[#allocation2 + $0x58] sm:$0xff] %v838
    %843 = vrot.lane.b32.xlu0 %v715, 1
    %v844 = vpop.permute.xlu0 %843
    %845 = vrot.lane.b32.xlu0 %v719, 1
    %v846 = vpop.permute.xlu0 %845
    %847 = vrot.lane.b32.xlu0 %v716, 1
    %v848 = vpop.permute.xlu0 %847
    %849 = vrot.lane.b32.xlu0 %v720, 1
    %v850 = vpop.permute.xlu0 %849
    %851 = vrot.lane.b32.xlu0 %v717, 1
    %v852 = vpop.permute.xlu0 %851
    %853 = vrot.lane.b32.xlu0 %v721, 1
    %v854 = vpop.permute.xlu0 %853
    %855 = vrot.lane.b32.xlu0 %v718, 1
    %v856 = vpop.permute.xlu0 %855
    %857 = vrot.lane.b32.xlu0 %v722, 1
    %v858 = vpop.permute.xlu0 %857
    %v859 = vsel %vm293, %v852, %v856
    %v860 = vsel %vm293, %v854, %v858
    %v861 = vsel %vm293, %v848, %v852
    %v862 = vsel %vm293, %v850, %v854
    %v863 = vsel %vm293, %v844, %v848
    %v864 = vsel %vm293, %v846, %v850
    %v865 = vsel %vm293, %v856, %v844
    %v866 = vsel %vm293, %v858, %v846
    %v867 = vmul.f32 %v865, %v305
    %v868 = vmul.f32 %v863, %v309
    %v869 = vmul.f32 %v861, %v313
    %v870 = vmul.f32 %v859, %v317
    %v871 = vmul.f32 %v866, %v305
    %v872 = vmul.f32 %v864, %v309
    %v873 = vmul.f32 %v862, %v313
    %v874 = vmul.f32 %v860, %v317
    %v875 = vpack.c.bf16 %v871, %v867
    %v876 = vpack.c.bf16 %v872, %v868
    %v877 = vpack.c.bf16 %v873, %v869
    %v878 = vpack.c.bf16 %v874, %v870
    %879 = vst [vmem:[#allocation2 + $0x60] sm:$0xff] %v875
    %880 = vst [vmem:[#allocation2 + $0x68] sm:$0xff] %v876
    %881 = vst [vmem:[#allocation2 + $0x70] sm:$0xff] %v877
    %882 = vst [vmem:[#allocation2 + $0x78] sm:$0xff] %v878
    %v883 = vpack.c.bf16 %v719, %v715
    %v884 = vpack.c.bf16 %v720, %v716
    %v885 = vpack.c.bf16 %v721, %v717
    %v886 = vpack.c.bf16 %v722, %v718
    %887 = vst [vmem:[#allocation2 + $0x80] sm:$0xff] %v883
    %888 = vst [vmem:[#allocation2 + $0x88] sm:$0xff] %v884
    %889 = vst [vmem:[#allocation2 + $0x90] sm:$0xff] %v885
    %890 = vst [vmem:[#allocation2 + $0x98] sm:$0xff] %v886
    %891 = vrot.lane.b32.xlu0 %v715, 127
    %v892 = vpop.permute.xlu0 %891
    %893 = vrot.lane.b32.xlu0 %v719, 127
    %v894 = vpop.permute.xlu0 %893
    %895 = vrot.lane.b32.xlu0 %v716, 127
    %v896 = vpop.permute.xlu0 %895
    %897 = vrot.lane.b32.xlu0 %v720, 127
    %v898 = vpop.permute.xlu0 %897
    %899 = vrot.lane.b32.xlu0 %v717, 127
    %v900 = vpop.permute.xlu0 %899
    %901 = vrot.lane.b32.xlu0 %v721, 127
    %v902 = vpop.permute.xlu0 %901
    %903 = vrot.lane.b32.xlu0 %v718, 127
    %v904 = vpop.permute.xlu0 %903
    %905 = vrot.lane.b32.xlu0 %v722, 127
    %v906 = vpop.permute.xlu0 %905
    %v907 = vsel %vm358, %v900, %v904
    %v908 = vsel %vm358, %v902, %v906
    %v909 = vsel %vm358, %v896, %v900
    %v910 = vsel %vm358, %v898, %v902
    %v911 = vsel %vm358, %v892, %v896
    %v912 = vsel %vm358, %v894, %v898
    %v913 = vsel %vm358, %v904, %v892
    %v914 = vsel %vm358, %v906, %v894
    %v915 = vmul.f32 %v911, %v370
    %v916 = vmul.f32 %v909, %v374
    %v917 = vmul.f32 %v907, %v378
    %v918 = vmul.f32 %v913, %v382
    %v919 = vmul.f32 %v912, %v370
    %v920 = vmul.f32 %v910, %v374
    %v921 = vmul.f32 %v908, %v378
    %v922 = vmul.f32 %v914, %v382
    %v923 = vpack.c.bf16 %v919, %v915
    %v924 = vpack.c.bf16 %v920, %v916
    %v925 = vpack.c.bf16 %v921, %v917
    %v926 = vpack.c.bf16 %v922, %v918
    %927 = vst [vmem:[#allocation2 + $0xa0] sm:$0xff] %v923
    %928 = vst [vmem:[#allocation2 + $0xa8] sm:$0xff] %v924
    %929 = vst [vmem:[#allocation2 + $0xb0] sm:$0xff] %v925
    %930 = vst [vmem:[#allocation2 + $0xb8] sm:$0xff] %v926
    %931 = vrot.lane.b32.xlu0 %v715, 113
    %v932 = vpop.permute.xlu0 %931
    %933 = vrot.lane.b32.xlu0 %v719, 113
    %v934 = vpop.permute.xlu0 %933
    %935 = vrot.lane.b32.xlu0 %v716, 113
    %v936 = vpop.permute.xlu0 %935
    %937 = vrot.lane.b32.xlu0 %v720, 113
    %v938 = vpop.permute.xlu0 %937
    %939 = vrot.lane.b32.xlu0 %v717, 113
    %v940 = vpop.permute.xlu0 %939
    %941 = vrot.lane.b32.xlu0 %v721, 113
    %v942 = vpop.permute.xlu0 %941
    %943 = vrot.lane.b32.xlu0 %v718, 113
    %v944 = vpop.permute.xlu0 %943
    %945 = vrot.lane.b32.xlu0 %v722, 113
    %v946 = vpop.permute.xlu0 %945
    %v947 = vsel %vm415, %v940, %v944
    %v948 = vsel %vm415, %v942, %v946
    %v949 = vsel %vm415, %v936, %v940
    %v950 = vsel %vm415, %v938, %v942
    %v951 = vsel %vm415, %v932, %v936
    %v952 = vsel %vm415, %v934, %v938
    %v953 = vsel %vm415, %v944, %v932
    %v954 = vsel %vm415, %v946, %v934
    %v955 = vmul.f32 %v951, %v427
    %v956 = vmul.f32 %v949, %v431
    %v957 = vmul.f32 %v947, %v435
    %v958 = vmul.f32 %v953, %v439
    %v959 = vmul.f32 %v952, %v427
    %v960 = vmul.f32 %v950, %v431
    %v961 = vmul.f32 %v948, %v435
    %v962 = vmul.f32 %v954, %v439
    %v963 = vpack.c.bf16 %v959, %v955
    %v964 = vpack.c.bf16 %v960, %v956
    %v965 = vpack.c.bf16 %v961, %v957
    %v966 = vpack.c.bf16 %v962, %v958
    %967 = vst [vmem:[#allocation2 + $0xc0] sm:$0xff] %v963
    %968 = vst [vmem:[#allocation2 + $0xc8] sm:$0xff] %v964
    %969 = vst [vmem:[#allocation2 + $0xd0] sm:$0xff] %v965
    %970 = vst [vmem:[#allocation2 + $0xd8] sm:$0xff] %v966
    %971 = vrot.lane.b32.xlu0 %v715, 112
    %v972 = vpop.permute.xlu0 %971
    %973 = vrot.lane.b32.xlu0 %v719, 112
    %v974 = vpop.permute.xlu0 %973
    %975 = vrot.lane.b32.xlu0 %v716, 112
    %v976 = vpop.permute.xlu0 %975
    %977 = vrot.lane.b32.xlu0 %v720, 112
    %v978 = vpop.permute.xlu0 %977
    %979 = vrot.lane.b32.xlu0 %v717, 112
    %v980 = vpop.permute.xlu0 %979
    %981 = vrot.lane.b32.xlu0 %v721, 112
    %v982 = vpop.permute.xlu0 %981
    %983 = vrot.lane.b32.xlu0 %v718, 112
    %v984 = vpop.permute.xlu0 %983
    %985 = vrot.lane.b32.xlu0 %v722, 112
    %v986 = vpop.permute.xlu0 %985
    %v987 = vsel %vm472, %v980, %v984
    %v988 = vsel %vm472, %v982, %v986
    %v989 = vsel %vm472, %v976, %v980
    %v990 = vsel %vm472, %v978, %v982
    %v991 = vsel %vm472, %v972, %v976
    %v992 = vsel %vm472, %v974, %v978
    %v993 = vsel %vm472, %v984, %v972
    %v994 = vsel %vm472, %v986, %v974
    %v995 = vmul.f32 %v991, %v484
    %v996 = vmul.f32 %v989, %v488
    %v997 = vmul.f32 %v987, %v492
    %v998 = vmul.f32 %v993, %v496
    %v999 = vmul.f32 %v992, %v484
    %v1000 = vmul.f32 %v990, %v488
    %v1001 = vmul.f32 %v988, %v492
    %v1002 = vmul.f32 %v994, %v496
    %v1003 = vpack.c.bf16 %v999, %v995
    %v1004 = vpack.c.bf16 %v1000, %v996
    %v1005 = vpack.c.bf16 %v1001, %v997
    %v1006 = vpack.c.bf16 %v1002, %v998
    %1007 = vst [vmem:[#allocation2 + $0xe0] sm:$0xff] %v1003
    %1008 = vst [vmem:[#allocation2 + $0xe8] sm:$0xff] %v1004
    %1009 = vst [vmem:[#allocation2 + $0xf0] sm:$0xff] %v1005
    %1010 = vst [vmem:[#allocation2 + $0xf8] sm:$0xff] %v1006
    %1011 = vrot.lane.b32.xlu0 %v715, 111
    %v1012 = vpop.permute.xlu0 %1011
    %1013 = vrot.lane.b32.xlu0 %v719, 111
    %v1014 = vpop.permute.xlu0 %1013
    %1015 = vrot.lane.b32.xlu0 %v716, 111
    %v1016 = vpop.permute.xlu0 %1015
    %1017 = vrot.lane.b32.xlu0 %v720, 111
    %v1018 = vpop.permute.xlu0 %1017
    %1019 = vrot.lane.b32.xlu0 %v717, 111
    %v1020 = vpop.permute.xlu0 %1019
    %1021 = vrot.lane.b32.xlu0 %v721, 111
    %v1022 = vpop.permute.xlu0 %1021
    %1023 = vrot.lane.b32.xlu0 %v718, 111
    %v1024 = vpop.permute.xlu0 %1023
    %1025 = vrot.lane.b32.xlu0 %v722, 111
    %v1026 = vpop.permute.xlu0 %1025
    %v1027 = vsel %vm529, %v1020, %v1024
    %v1028 = vsel %vm529, %v1022, %v1026
    %v1029 = vsel %vm529, %v1016, %v1020
    %v1030 = vsel %vm529, %v1018, %v1022
    %v1031 = vsel %vm529, %v1012, %v1016
    %v1032 = vsel %vm529, %v1014, %v1018
    %v1033 = vsel %vm529, %v1024, %v1012
    %v1034 = vsel %vm529, %v1026, %v1014
    %v1035 = vmul.f32 %v1031, %v541
    %v1036 = vmul.f32 %v1029, %v545
    %v1037 = vmul.f32 %v1027, %v549
    %v1038 = vmul.f32 %v1033, %v553
    %v1039 = vmul.f32 %v1032, %v541
    %v1040 = vmul.f32 %v1030, %v545
    %v1041 = vmul.f32 %v1028, %v549
    %v1042 = vmul.f32 %v1034, %v553
    %v1043 = vpack.c.bf16 %v1039, %v1035
    %v1044 = vpack.c.bf16 %v1040, %v1036
    %v1045 = vpack.c.bf16 %v1041, %v1037
    %v1046 = vpack.c.bf16 %v1042, %v1038
    %1047 = vst [vmem:[#allocation2 + $0x100] sm:$0xff] %v1043
    %1048 = vst [vmem:[#allocation2 + $0x108] sm:$0xff] %v1044
    %1049 = vst [vmem:[#allocation2 + $0x110] sm:$0xff] %v1045
    %1050 = vst [vmem:[#allocation2 + $0x118] sm:$0xff] %v1046
    %v1051 = vld [vmem:[%s4] sm:$0xff]
    %v1052 = vld [vmem:[%s4 + $0x8] sm:$0xff]
    %v1053 = vld [vmem:[#allocation2] sm:$0xff]
    %v1054 = vld [vmem:[#allocation2 + $0x8] sm:$0xff]
    %v1055 = vld [vmem:[#allocation2 + $0x10] sm:$0xff]
    %v1056 = vld [vmem:[#allocation2 + $0x18] sm:$0xff]
    %v1057 = vld [vmem:[#allocation2 + $0x20] sm:$0xff]
    %v1058 = vld [vmem:[#allocation2 + $0x28] sm:$0xff]
    %v1059 = vld [vmem:[#allocation2 + $0x30] sm:$0xff]
    %v1060 = vld [vmem:[#allocation2 + $0x38] sm:$0xff]
    %v1061 = vld [vmem:[#allocation2 + $0x40] sm:$0xff]
    %v1062 = vld [vmem:[#allocation2 + $0x48] sm:$0xff]
    %v1063 = vld [vmem:[#allocation2 + $0x50] sm:$0xff]
    %v1064 = vld [vmem:[#allocation2 + $0x58] sm:$0xff]
    %v1065 = vld [vmem:[#allocation2 + $0x60] sm:$0xff]
    %v1066 = vld [vmem:[#allocation2 + $0x68] sm:$0xff]
    %v1067 = vld [vmem:[#allocation2 + $0x70] sm:$0xff]
    %v1068 = vld [vmem:[#allocation2 + $0x78] sm:$0xff]
    %v1069 = vld [vmem:[#allocation2 + $0x80] sm:$0xff]
    %v1070 = vld [vmem:[#allocation2 + $0x88] sm:$0xff]
    %v1071 = vld [vmem:[#allocation2 + $0x90] sm:$0xff]
    %v1072 = vld [vmem:[#allocation2 + $0x98] sm:$0xff]
    %v1073 = vld [vmem:[#allocation2 + $0xa0] sm:$0xff]
    %v1074 = vld [vmem:[#allocation2 + $0xa8] sm:$0xff]
    %v1075 = vld [vmem:[#allocation2 + $0xb0] sm:$0xff]
    %v1076 = vld [vmem:[#allocation2 + $0xb8] sm:$0xff]
    %v1077 = vld [vmem:[#allocation2 + $0xc0] sm:$0xff]
    %v1078 = vld [vmem:[#allocation2 + $0xc8] sm:$0xff]
    %v1079 = vld [vmem:[#allocation2 + $0xd0] sm:$0xff]
    %v1080 = vld [vmem:[#allocation2 + $0xd8] sm:$0xff]
    %v1081 = vld [vmem:[#allocation2 + $0xe0] sm:$0xff]
    %v1082 = vld [vmem:[#allocation2 + $0xe8] sm:$0xff]
    %v1083 = vld [vmem:[#allocation2 + $0xf0] sm:$0xff]
    %v1084 = vld [vmem:[#allocation2 + $0xf8] sm:$0xff]
    %v1085 = vld [vmem:[#allocation2 + $0x100] sm:$0xff]
    %v1086 = vld [vmem:[#allocation2 + $0x108] sm:$0xff]
    %v1087 = vld [vmem:[#allocation2 + $0x110] sm:$0xff]
    %v1088 = vld [vmem:[#allocation2 + $0x118] sm:$0xff]
    %v1091 = vunpack.c.l.b16 %v1051
    %v1092 = vunpack.c.h.b16 %v1051
    %v1093 = vunpack.c.l.b16 %v1052
    %v1094 = vunpack.c.h.b16 %v1052
    %v1095 = vpack.c.b16 %v1093, %v1091
    %v1096 = vpack.c.b16 %v1094, %v1092
    %v1099 = vsel %vm625, %v1096, 0
    %1101 = vmatprep.subr.bf16.mxu0 %v1054
    %1102 = vmatpush1.bf16.msra.mxu0 %v1053
    %1103 = vmatprep.subr.bf16.mxu0 %v1058
    %1104 = vmatpush1.bf16.msra.mxu0 %v1057
    %1105 = vmatprep.subr.bf16.mxu0 %v1062
    %1106 = vmatpush1.bf16.msra.mxu0 %v1061
    %1107 = vmatprep.subr.bf16.mxu0 %v1066
    %1108 = vmatpush1.bf16.msra.mxu0 %v1065
    %1109 = vmatprep.subr.bf16.mxu0 %v1070
    %1110 = vmatpush1.bf16.msra.mxu0 %v1069
    %1111 = vmatprep.subr.bf16.mxu0 %v1074
    %1112 = vmatpush1.bf16.msra.mxu0 %v1073
    %1113 = vmatprep.subr.bf16.mxu0 %v1078
    %1114 = vmatpush1.bf16.msra.mxu0 %v1077
    %1115 = vmatprep.subr.bf16.mxu0 %v1082
    %1116 = vmatpush1.bf16.msra.mxu0 %v1081
    %1117 = vmatprep.subr.bf16.mxu0 %v1086
    %1118 = vmatpush1.bf16.msra.mxu0 %v1085
    %1119 = vmatprep.subr.bf16.mxu0 0
    %1120 = vmatpush1.bf16.msra.mxu0 0
    %1121 = vmatprep.subr.bf16.mxu0 0
    %1122 = vmatpush1.bf16.msra.mxu0 0
    %1123 = vmatprep.subr.bf16.mxu0 0
    %1124 = vmatpush1.bf16.msra.mxu0 0
    %1125 = vmatprep.subr.bf16.mxu0 0
    %1126 = vmatpush1.bf16.msra.mxu0 0
    %1127 = vmatprep.subr.bf16.mxu0 0
    %1128 = vmatpush1.bf16.msra.mxu0 0
    %1129 = vmatprep.subr.bf16.mxu0 0
    %1130 = vmatpush1.bf16.msra.mxu0 0
    %1131 = vmatprep.subr.bf16.mxu0 0
    %1132 = vmatpush1.bf16.msra.mxu0 0
    %1133 = vmatprep.mubr.bf16.mxu0 %v1099
    %1134 = vmatmul.mubr.bf16.gmra.mrb[0].mxu0 %v1095
    %v1135 = vpop.f32.mrb[0].mxu0
    %v1136 = vadd.f32 %v54, %v1135
    %v1137 = vpop.f32.mrb[0].mxu0
    %v1138 = vadd.f32 %v55, %v1137
    %v1139 = vpop.f32.mrb[0].mxu0
    %v1140 = vadd.f32 %v58, %v1139
    %v1141 = vpop.f32.mrb[0].mxu0
    %v1142 = vadd.f32 %v59, %v1141
    %1143 = vdwg.mxu0
    %1144 = vmatprep.subr.bf16.mxu0 %v1056
    %1145 = vmatpush1.bf16.msra.mxu0 %v1055
    %1146 = vmatprep.subr.bf16.mxu0 %v1060
    %1147 = vmatpush1.bf16.msra.mxu0 %v1059
    %1148 = vmatprep.subr.bf16.mxu0 %v1064
    %1149 = vmatpush1.bf16.msra.mxu0 %v1063
    %1150 = vmatprep.subr.bf16.mxu0 %v1068
    %1151 = vmatpush1.bf16.msra.mxu0 %v1067
    %1152 = vmatprep.subr.bf16.mxu0 %v1072
    %1153 = vmatpush1.bf16.msra.mxu0 %v1071
    %1154 = vmatprep.subr.bf16.mxu0 %v1076
    %1155 = vmatpush1.bf16.msra.mxu0 %v1075
    %1156 = vmatprep.subr.bf16.mxu0 %v1080
    %1157 = vmatpush1.bf16.msra.mxu0 %v1079
    %1158 = vmatprep.subr.bf16.mxu0 %v1084
    %1159 = vmatpush1.bf16.msra.mxu0 %v1083
    %1160 = vmatprep.subr.bf16.mxu0 %v1088
    %1161 = vmatpush1.bf16.msra.mxu0 %v1087
    %1162 = vmatprep.subr.bf16.mxu0 0
    %1163 = vmatpush1.bf16.msra.mxu0 0
    %1164 = vmatprep.subr.bf16.mxu0 0
    %1165 = vmatpush1.bf16.msra.mxu0 0
    %1166 = vmatprep.subr.bf16.mxu0 0
    %1167 = vmatpush1.bf16.msra.mxu0 0
    %1168 = vmatprep.subr.bf16.mxu0 0
    %1169 = vmatpush1.bf16.msra.mxu0 0
    %1170 = vmatprep.subr.bf16.mxu0 0
    %1171 = vmatpush1.bf16.msra.mxu0 0
    %1172 = vmatprep.subr.bf16.mxu0 0
    %1173 = vmatpush1.bf16.msra.mxu0 0
    %1174 = vmatprep.subr.bf16.mxu0 0
    %1175 = vmatpush1.bf16.msra.mxu0 0
    %1176 = vmatprep.mubr.bf16.mxu0 %v1099
    %1177 = vmatmul.mubr.bf16.gmra.mrb[0].mxu0 %v1095
    %v1178 = vpop.f32.mrb[0].mxu0
    %v1179 = vadd.f32 %v56, %v1178
    %v1180 = vpop.f32.mrb[0].mxu0
    %v1181 = vadd.f32 %v57, %v1180
    %v1182 = vpop.f32.mrb[0].mxu0
    %v1183 = vadd.f32 %v60, %v1182
    %v1184 = vpop.f32.mrb[0].mxu0
    %v1185 = vadd.f32 %v61, %v1184
    %1186 = vdwg.mxu0
    %1187 = vst [vmem:[#allocation8] sm:$0xff] %v1136
    %1188 = vst [vmem:[#allocation8 + $0x8] sm:$0xff] %v1138
    %1189 = vst [vmem:[#allocation8 + $0x10] sm:$0xff] %v1179
    %1190 = vst [vmem:[#allocation8 + $0x18] sm:$0xff] %v1181
    %1191 = vst [vmem:[#allocation8 + $0x20] sm:$0xff] %v1140
    %1192 = vst [vmem:[#allocation8 + $0x28] sm:$0xff] %v1142
    %1193 = vst [vmem:[#allocation8 + $0x30] sm:$0xff] %v1183
    %1194 = vst [vmem:[#allocation8 + $0x38] sm:$0xff] %v1185
    // Predicated region
    $region30: #{tpu_custom_call.1} parent=1 // pred_check
      _
    $region31: #{tpu_custom_call.1} parent=1 // pred_check_branch
      %1196 = sbr.rel (0) target = $region33
    $region32: #{tpu_custom_call.1} parent=1 // pred_region
      %s1198 = ssub.s32 1024, 1024
      %1199 = vsyncadd [#allocation5], %s1198
      %s1200 = sshll.u32 [#allocation8], 4
      %s1201 = int_to_ptr.vmem [resolvable:$true] %s1200
      %1206 = dma.vmem_to_hbm [thread:$0]  %s1201, 1024, %s5, [#allocation5], 512, 512, 32
    $region33: #{tpu_custom_call.1} parent=1 // pred_fallthru
      _
    // Predicated region
    $region34: #{tpu_custom_call.1} parent=1 // pred_check
      _
    $region35: #{tpu_custom_call.1} parent=1 // pred_check_branch
      %1208 = sbr.rel (0) target = $region37
    $region36: #{tpu_custom_call.1} parent=1 // pred_region
      %1209 = dma.done [#allocation5], 1024
    $region37: #{tpu_custom_call.1} parent=1 // pred_fallthru
      _
    %1210 = vsyncpa [#allocation4], 1
    %1211 = vsyncpa [#allocation7], 1
    %1212 = vsyncpa [#allocation5], 1

</llo_original>
